<compile_context>
chip_gen: v6e
topology: v6e:2x2x1
jax: 0.10.0
libtpu: 0.0.40
codegen_flags: <defaults>
</compile_context>

<pallas_src>
import jax
import jax.numpy as jnp
from jax.experimental import pallas as pl
from jax.experimental.pallas import tpu as pltpu

# -------- module hyper-parameters (PyTorch __init__ defaults) --------
ACTION_SIZE = 31
SEQ_LEN = 10
NOISE_SIZE = 16
EMBED_DIM = 16
HIDDEN = 64
L1 = 64
OUT_DIM = 25 + 4 + ACTION_SIZE  # 60
OUT_PAD = 128                   # lane-dense output width (sliced to OUT_DIM)
NOISE_STD = 1.0
IN_DIM = 3 + EMBED_DIM          # 19
K_PAD = 32                      # sublane-aligned contraction dim for x @ Wih


def generator_kernel(x_ref, wih_ref, whh_ref, b_ref, noise_ref,
                     w1h_ref, w1n_ref, w2_ref, w3_ref, out_ref, pre_ref):
    """LSTM over the sequence (h0=c0=0), take last hidden state, then
    linear_1 -> relu -> linear_2 -> relu -> linear_3 -> sigmoid.

    Gate column layout (reordered in the wrapper): [i | f | o | g].
    """
    H = HIDDEN
    Bp = noise_ref.shape[0]              # padded batch (multiple of 8)
    seq = x_ref.shape[0] // Bp

    # Hoisted input projection: one big MXU launch + bias broadcast, entirely
    # off the recurrence critical path. Parked in VMEM scratch so it does not
    # occupy ~20 vregs across the unrolled loop (spill avoidance).
    pre_ref[...] = jnp.dot(x_ref[...], wih_ref[...],
                           preferred_element_type=jnp.float32) + b_ref[...]

    h = jnp.zeros((Bp, H), jnp.float32)
    c = jnp.zeros((Bp, H), jnp.float32)

    # Recurrence: fully unrolled (seq is a small static constant); h/c stay in
    # vregs, all slices are static. Loop body = 1 matmul + reduced gate math.
    # TODO(synk): if the bundle dump shows Mosaic re-pushing the 64x256 RHS
    # every step, drive the MXU explicitly (pltpu.matmul_push_rhs /
    # matmul_acc_lhs / matmul_pop) to keep whh resident in the weight regs.
    for t in range(seq):
        gates = pre_ref[t * Bp:(t + 1) * Bp, :] + jnp.dot(
            h.astype(jnp.bfloat16), whh_ref[...],
            preferred_element_type=jnp.float32)
        # sigmoid on the contiguous 192-lane prefix [i|f|o], tanh only on the
        # final 64 lanes [g]: ~40% less EUP work on the serial chain.
        sig = jax.nn.sigmoid(gates[:, :3 * H])
        g = jnp.tanh(gates[:, 3 * H:])
        i = sig[:, 0 * H:1 * H]
        f = sig[:, 1 * H:2 * H]
        o = sig[:, 2 * H:3 * H]
        c = f * c + i * g
        h = o * jnp.tanh(c)

    # MLP head. linear_1 on concat([h, noise]) as a split matmul (no lane concat).
    hb = h.astype(jnp.bfloat16)
    a1 = jnp.maximum(
        jnp.dot(hb, w1h_ref[...], preferred_element_type=jnp.float32)
        + jnp.dot(noise_ref[...], w1n_ref[...],
                  preferred_element_type=jnp.float32),
        0.0)
    a2 = jnp.maximum(
        jnp.dot(a1.astype(jnp.bfloat16), w2_ref[...],
                preferred_element_type=jnp.float32), 0.0)
    # w3 is zero-padded to 128 columns -> lane-dense, unmasked store.
    out_ref[...] = jax.nn.sigmoid(
        jnp.dot(a2.astype(jnp.bfloat16), w3_ref[...],
                preferred_element_type=jnp.float32))


def _reorder_gates(w):
    """Permute PyTorch LSTM gate order [i|f|g|o] -> kernel order [i|f|o|g]."""
    H = HIDDEN
    return jnp.concatenate(
        [w[..., 0:H], w[..., H:2 * H], w[..., 3 * H:4 * H], w[..., 2 * H:3 * H]],
        axis=-1)


def init_params(key):
    ks = jax.random.split(key, 8)
    s_lstm = 1.0 / jnp.sqrt(jnp.float32(HIDDEN))
    s_l1 = 1.0 / jnp.sqrt(jnp.float32(HIDDEN + NOISE_SIZE))
    s_l2 = 1.0 / jnp.sqrt(jnp.float32(2 * L1))
    s_l3 = 1.0 / jnp.sqrt(jnp.float32(L1))
    return {
        "embedding": jax.random.normal(ks[0], (ACTION_SIZE, EMBED_DIM), jnp.float32),
        "wih": jax.random.uniform(ks[1], (IN_DIM, 4 * HIDDEN), jnp.float32, -s_lstm, s_lstm),
        "whh": jax.random.uniform(ks[2], (HIDDEN, 4 * HIDDEN), jnp.float32, -s_lstm, s_lstm),
        # PyTorch LSTM has b_ih + b_hh; store their sum.
        "b": (jax.random.uniform(ks[3], (4 * HIDDEN,), jnp.float32, -s_lstm, s_lstm)
              + jax.random.uniform(ks[4], (4 * HIDDEN,), jnp.float32, -s_lstm, s_lstm)
              ).reshape(1, 4 * HIDDEN),
        "w1": jax.random.uniform(ks[5], (HIDDEN + NOISE_SIZE, 2 * L1), jnp.float32, -s_l1, s_l1),
        "w2": jax.random.uniform(ks[6], (2 * L1, L1), jnp.float32, -s_l2, s_l2),
        "w3": jax.random.uniform(ks[7], (L1, OUT_DIM), jnp.float32, -s_l3, s_l3),
    }


def generator_forward(data, params, noise):
    """data: (batch, seq, 4) float32; col 3 holds integer action ids."""
    batch, seq = data.shape[0], data.shape[1]
    idx = data[:, :, 3].astype(jnp.int32)                          # (B, S)
    embeds = params["embedding"][idx]                              # (B, S, E)
    temporal = jnp.concatenate([data[:, :, :3], embeds], axis=2)   # (B, S, 19)
    x_tm = jnp.transpose(temporal, (1, 0, 2)).astype(jnp.float32)  # (S, B, 19)

    # pad batch to a sublane multiple (8); padded rows are zeros.
    bp = max(8, ((batch + 7) // 8) * 8)
    pad = bp - batch
    if pad:
        x_tm = jnp.pad(x_tm, ((0, 0), (0, pad), (0, 0)))
        noise_p = jnp.pad(noise, ((0, pad), (0, 0)))
    else:
        noise_p = noise
    # pad contraction dim 19 -> 32 (sublane aligned), flatten time-major, bf16.
    x_flat = jnp.pad(x_tm, ((0, 0), (0, 0), (0, K_PAD - IN_DIM)))
    x_flat = x_flat.reshape(seq * bp, K_PAD).astype(jnp.bfloat16)  # (S*Bp, 32)

    # gate-reordered, K-padded, bf16 weights (exact permutation / zero pad).
    wih = jnp.pad(_reorder_gates(params["wih"]),
                  ((0, K_PAD - IN_DIM), (0, 0))).astype(jnp.bfloat16)   # (32, 256)
    whh = _reorder_gates(params["whh"]).astype(jnp.bfloat16)            # (64, 256)
    b = _reorder_gates(params["b"])                                      # (1, 256) f32
    w1h = params["w1"][:HIDDEN].astype(jnp.bfloat16)                     # (64, 128)
    w1n = params["w1"][HIDDEN:].astype(jnp.bfloat16)                     # (16, 128)
    w2 = params["w2"].astype(jnp.bfloat16)                               # (128, 64)
    w3p = jnp.pad(params["w3"],
                  ((0, 0), (0, OUT_PAD - OUT_DIM))).astype(jnp.bfloat16)  # (64, 128)
    noise_bf = noise_p.astype(jnp.bfloat16)

    vmem = pl.BlockSpec(memory_space=pltpu.MemorySpace.VMEM)
    out = pl.pallas_call(
        generator_kernel,
        out_shape=jax.ShapeDtypeStruct((bp, OUT_PAD), jnp.float32),
        in_specs=[vmem] * 9,
        out_specs=vmem,
        scratch_shapes=[pltpu.VMEM((seq * bp, 4 * HIDDEN), jnp.float32)],
    )(x_flat, wih, whh, b, noise_bf, w1h, w1n, w2, w3p)
    # strip batch / lane padding; .squeeze() matches PyTorch's temporal.squeeze()
    return jnp.squeeze(out[:batch, :OUT_DIM])


def reference_forward(data, params, noise):
    """Pure-JAX reference (mirrors the PyTorch forward), default precision."""
    idx = data[:, :, 3].astype(jnp.int32)
    embeds = params["embedding"][idx]
    x = jnp.concatenate([data[:, :, :3], embeds], axis=2)  # (B, S, 19)
    B = x.shape[0]
    h = jnp.zeros((B, HIDDEN), jnp.float32)
    c = jnp.zeros((B, HIDDEN), jnp.float32)
    for t in range(x.shape[1]):
        gates = jnp.dot(x[:, t], params["wih"]) + jnp.dot(h, params["whh"]) + params["b"]
        i = jax.nn.sigmoid(gates[:, 0 * HIDDEN:1 * HIDDEN])
        f = jax.nn.sigmoid(gates[:, 1 * HIDDEN:2 * HIDDEN])
        g = jnp.tanh(gates[:, 2 * HIDDEN:3 * HIDDEN])
        o = jax.nn.sigmoid(gates[:, 3 * HIDDEN:4 * HIDDEN])
        c = f * c + i * g
        h = o * jnp.tanh(c)
    z = jnp.concatenate([h, noise], axis=1)
    a = jnp.maximum(jnp.dot(z, params["w1"]), 0.0)
    a = jnp.maximum(jnp.dot(a, params["w2"]), 0.0)
    return jnp.squeeze(jax.nn.sigmoid(jnp.dot(a, params["w3"])))


if __name__ == "__main__":
    key = jax.random.PRNGKey(0)
    k_param, k_cont, k_act, k_noise = jax.random.split(key, 4)

    BATCH = 4
    params = init_params(k_param)

    cont = jax.random.normal(k_cont, (BATCH, SEQ_LEN, 3), jnp.float32)
    actions = jax.random.randint(k_act, (BATCH, SEQ_LEN, 1), 0, ACTION_SIZE)
    data = jnp.concatenate([cont, actions.astype(jnp.float32)], axis=2)  # (B, S, 4)

    # make_noise(...) equivalent: deterministic Gaussian noise, std=noise_std
    noise = NOISE_STD * jax.random.normal(k_noise, (BATCH, NOISE_SIZE), jnp.float32)

    out = generator_forward(data, params, noise)
    out = jax.block_until_ready(out)

    ref = reference_forward(data, params, noise)
    assert out.shape == (BATCH, OUT_DIM), out.shape
    # Tolerance accounts for bf16 MXU operands (default precision is already a
    # single bf16 pass) and op-ordering differences (hoisted bias, split w1
    # matmul) vs the step-by-step XLA reference; outputs are post-sigmoid.
    assert jnp.allclose(out, ref, atol=2e-2, rtol=2e-2), "mismatch vs reference"

    print("KERNEL_OK")
</pallas_src>

<mosaic_0001>
module attributes {stable_mosaic.version = 11 : i64} {
  func.func @generator_kernel(%arg0: memref<80x32xbf16, #tpu.memory_space<vmem>>, %arg1: memref<32x256xbf16, #tpu.memory_space<vmem>>, %arg2: memref<64x256xbf16, #tpu.memory_space<vmem>>, %arg3: memref<1x256xf32, #tpu.memory_space<vmem>>, %arg4: memref<8x16xbf16, #tpu.memory_space<vmem>>, %arg5: memref<64x128xbf16, #tpu.memory_space<vmem>>, %arg6: memref<16x128xbf16, #tpu.memory_space<vmem>>, %arg7: memref<128x64xbf16, #tpu.memory_space<vmem>>, %arg8: memref<64x128xbf16, #tpu.memory_space<vmem>>, %arg9: memref<8x128xf32, #tpu.memory_space<vmem>>, %arg10: memref<80x256xf32, #tpu.memory_space<vmem>>) attributes {dimension_semantics = [], scalar_prefetch = 0 : i64, scratch_operands = 1 : i64, tpu.core_type = #tpu.core_type<tc>} {
    %c0 = arith.constant 0 : index
    %c0_0 = arith.constant 0 : index
    %0 = vector.load %arg0[%c0, %c0_0] : memref<80x32xbf16, #tpu.memory_space<vmem>>, vector<80x32xbf16>
    %c0_1 = arith.constant 0 : index
    %c0_2 = arith.constant 0 : index
    %1 = vector.load %arg1[%c0_1, %c0_2] : memref<32x256xbf16, #tpu.memory_space<vmem>>, vector<32x256xbf16>
    %cst = arith.constant dense<0.000000e+00> : vector<80x256xf32>
    %2 = tpu.matmul %0, %1, %cst {dimension_numbers = #tpu.dot_dimension_numbers<[1], [0], [0], [1], [0, 0, 1, 1], [], []>} : vector<80x32xbf16>, vector<32x256xbf16>, vector<80x256xf32> -> vector<80x256xf32>
    %c0_3 = arith.constant 0 : index
    %c0_4 = arith.constant 0 : index
    %3 = vector.load %arg3[%c0_3, %c0_4] : memref<1x256xf32, #tpu.memory_space<vmem>>, vector<1x256xf32>
    %4 = vector.broadcast %3 : vector<1x256xf32> to vector<80x256xf32>
    %5 = arith.addf %2, %4 : vector<80x256xf32>
    %c0_5 = arith.constant 0 : index
    %c0_6 = arith.constant 0 : index
    %6 = vector.load %arg10[%c0_5, %c0_6] : memref<80x256xf32, #tpu.memory_space<vmem>>, vector<80x256xf32>
    tpu.vector_store %arg10[%c0_5, %c0_6], %5 {strides = array<i32>} : memref<80x256xf32, #tpu.memory_space<vmem>>, vector<80x256xf32>,
    %cst_7 = arith.constant 0.000000e+00 : f32
    %7 = vector.broadcast %cst_7 : f32 to vector<8x64xf32>
    %cst_8 = arith.constant 0.000000e+00 : f32
    %8 = vector.broadcast %cst_8 : f32 to vector<8x64xf32>
    %c0_9 = arith.constant 0 : index
    %c0_10 = arith.constant 0 : index
    %9 = vector.load %arg10[%c0_9, %c0_10] : memref<80x256xf32, #tpu.memory_space<vmem>>, vector<8x256xf32>
    %10 = arith.truncf %7 : vector<8x64xf32> to vector<8x64xbf16>
    %c0_11 = arith.constant 0 : index
    %c0_12 = arith.constant 0 : index
    %11 = vector.load %arg2[%c0_11, %c0_12] : memref<64x256xbf16, #tpu.memory_space<vmem>>, vector<64x256xbf16>
    %cst_13 = arith.constant dense<0.000000e+00> : vector<8x256xf32>
    %12 = tpu.matmul %10, %11, %cst_13 {dimension_numbers = #tpu.dot_dimension_numbers<[1], [0], [0], [1], [0, 0, 1, 1], [], []>} : vector<8x64xbf16>, vector<64x256xbf16>, vector<8x256xf32> -> vector<8x256xf32>
    %13 = arith.addf %9, %12 : vector<8x256xf32>
    %14 = vector.extract_strided_slice %13 {offsets = [0, 0], sizes = [8, 192], strides = [1, 1]} : vector<8x256xf32> to vector<8x192xf32>
    %15 = arith.negf %14 : vector<8x192xf32>
    %16 = math.exp %15 : vector<8x192xf32>
    %cst_14 = arith.constant 1.000000e+00 : f32
    %17 = vector.broadcast %cst_14 : f32 to vector<8x192xf32>
    %18 = arith.addf %17, %16 : vector<8x192xf32>
    %19 = arith.divf %17, %18 : vector<8x192xf32>
    %20 = vector.extract_strided_slice %13 {offsets = [0, 192], sizes = [8, 64], strides = [1, 1]} : vector<8x256xf32> to vector<8x64xf32>
    %21 = math.tanh %20 : vector<8x64xf32>
    %22 = vector.extract_strided_slice %19 {offsets = [0, 0], sizes = [8, 64], strides = [1, 1]} : vector<8x192xf32> to vector<8x64xf32>
    %23 = vector.extract_strided_slice %19 {offsets = [0, 64], sizes = [8, 64], strides = [1, 1]} : vector<8x192xf32> to vector<8x64xf32>
    %24 = vector.extract_strided_slice %19 {offsets = [0, 128], sizes = [8, 64], strides = [1, 1]} : vector<8x192xf32> to vector<8x64xf32>
    %25 = arith.mulf %23, %8 : vector<8x64xf32>
    %26 = arith.mulf %22, %21 : vector<8x64xf32>
    %27 = arith.addf %25, %26 : vector<8x64xf32>
    %28 = math.tanh %27 : vector<8x64xf32>
    %29 = arith.mulf %24, %28 : vector<8x64xf32>
    %c8 = arith.constant 8 : index
    %c0_15 = arith.constant 0 : index
    %30 = vector.load %arg10[%c8, %c0_15] : memref<80x256xf32, #tpu.memory_space<vmem>>, vector<8x256xf32>
    %31 = arith.truncf %29 : vector<8x64xf32> to vector<8x64xbf16>
    %c0_16 = arith.constant 0 : index
    %c0_17 = arith.constant 0 : index
    %32 = vector.load %arg2[%c0_16, %c0_17] : memref<64x256xbf16, #tpu.memory_space<vmem>>, vector<64x256xbf16>
    %cst_18 = arith.constant dense<0.000000e+00> : vector<8x256xf32>
    %33 = tpu.matmul %31, %32, %cst_18 {dimension_numbers = #tpu.dot_dimension_numbers<[1], [0], [0], [1], [0, 0, 1, 1], [], []>} : vector<8x64xbf16>, vector<64x256xbf16>, vector<8x256xf32> -> vector<8x256xf32>
    %34 = arith.addf %30, %33 : vector<8x256xf32>
    %35 = vector.extract_strided_slice %34 {offsets = [0, 0], sizes = [8, 192], strides = [1, 1]} : vector<8x256xf32> to vector<8x192xf32>
    %36 = arith.negf %35 : vector<8x192xf32>
    %37 = math.exp %36 : vector<8x192xf32>
    %cst_19 = arith.constant 1.000000e+00 : f32
    %38 = vector.broadcast %cst_19 : f32 to vector<8x192xf32>
    %39 = arith.addf %38, %37 : vector<8x192xf32>
    %40 = arith.divf %38, %39 : vector<8x192xf32>
    %41 = vector.extract_strided_slice %34 {offsets = [0, 192], sizes = [8, 64], strides = [1, 1]} : vector<8x256xf32> to vector<8x64xf32>
    %42 = math.tanh %41 : vector<8x64xf32>
    %43 = vector.extract_strided_slice %40 {offsets = [0, 0], sizes = [8, 64], strides = [1, 1]} : vector<8x192xf32> to vector<8x64xf32>
    %44 = vector.extract_strided_slice %40 {offsets = [0, 64], sizes = [8, 64], strides = [1, 1]} : vector<8x192xf32> to vector<8x64xf32>
    %45 = vector.extract_strided_slice %40 {offsets = [0, 128], sizes = [8, 64], strides = [1, 1]} : vector<8x192xf32> to vector<8x64xf32>
    %46 = arith.mulf %44, %27 : vector<8x64xf32>
    %47 = arith.mulf %43, %42 : vector<8x64xf32>
    %48 = arith.addf %46, %47 : vector<8x64xf32>
    %49 = math.tanh %48 : vector<8x64xf32>
    %50 = arith.mulf %45, %49 : vector<8x64xf32>
    %c16 = arith.constant 16 : index
    %c0_20 = arith.constant 0 : index
    %51 = vector.load %arg10[%c16, %c0_20] : memref<80x256xf32, #tpu.memory_space<vmem>>, vector<8x256xf32>
    %52 = arith.truncf %50 : vector<8x64xf32> to vector<8x64xbf16>
    %c0_21 = arith.constant 0 : index
    %c0_22 = arith.constant 0 : index
    %53 = vector.load %arg2[%c0_21, %c0_22] : memref<64x256xbf16, #tpu.memory_space<vmem>>, vector<64x256xbf16>
    %cst_23 = arith.constant dense<0.000000e+00> : vector<8x256xf32>
    %54 = tpu.matmul %52, %53, %cst_23 {dimension_numbers = #tpu.dot_dimension_numbers<[1], [0], [0], [1], [0, 0, 1, 1], [], []>} : vector<8x64xbf16>, vector<64x256xbf16>, vector<8x256xf32> -> vector<8x256xf32>
    %55 = arith.addf %51, %54 : vector<8x256xf32>
    %56 = vector.extract_strided_slice %55 {offsets = [0, 0], sizes = [8, 192], strides = [1, 1]} : vector<8x256xf32> to vector<8x192xf32>
    %57 = arith.negf %56 : vector<8x192xf32>
    %58 = math.exp %57 : vector<8x192xf32>
    %cst_24 = arith.constant 1.000000e+00 : f32
    %59 = vector.broadcast %cst_24 : f32 to vector<8x192xf32>
    %60 = arith.addf %59, %58 : vector<8x192xf32>
    %61 = arith.divf %59, %60 : vector<8x192xf32>
    %62 = vector.extract_strided_slice %55 {offsets = [0, 192], sizes = [8, 64], strides = [1, 1]} : vector<8x256xf32> to vector<8x64xf32>
    %63 = math.tanh %62 : vector<8x64xf32>
    %64 = vector.extract_strided_slice %61 {offsets = [0, 0], sizes = [8, 64], strides = [1, 1]} : vector<8x192xf32> to vector<8x64xf32>
    %65 = vector.extract_strided_slice %61 {offsets = [0, 64], sizes = [8, 64], strides = [1, 1]} : vector<8x192xf32> to vector<8x64xf32>
    %66 = vector.extract_strided_slice %61 {offsets = [0, 128], sizes = [8, 64], strides = [1, 1]} : vector<8x192xf32> to vector<8x64xf32>
    %67 = arith.mulf %65, %48 : vector<8x64xf32>
    %68 = arith.mulf %64, %63 : vector<8x64xf32>
    %69 = arith.addf %67, %68 : vector<8x64xf32>
    %70 = math.tanh %69 : vector<8x64xf32>
    %71 = arith.mulf %66, %70 : vector<8x64xf32>
    %c24 = arith.constant 24 : index
    %c0_25 = arith.constant 0 : index
    %72 = vector.load %arg10[%c24, %c0_25] : memref<80x256xf32, #tpu.memory_space<vmem>>, vector<8x256xf32>
    %73 = arith.truncf %71 : vector<8x64xf32> to vector<8x64xbf16>
    %c0_26 = arith.constant 0 : index
    %c0_27 = arith.constant 0 : index
    %74 = vector.load %arg2[%c0_26, %c0_27] : memref<64x256xbf16, #tpu.memory_space<vmem>>, vector<64x256xbf16>
    %cst_28 = arith.constant dense<0.000000e+00> : vector<8x256xf32>
    %75 = tpu.matmul %73, %74, %cst_28 {dimension_numbers = #tpu.dot_dimension_numbers<[1], [0], [0], [1], [0, 0, 1, 1], [], []>} : vector<8x64xbf16>, vector<64x256xbf16>, vector<8x256xf32> -> vector<8x256xf32>
    %76 = arith.addf %72, %75 : vector<8x256xf32>
    %77 = vector.extract_strided_slice %76 {offsets = [0, 0], sizes = [8, 192], strides = [1, 1]} : vector<8x256xf32> to vector<8x192xf32>
    %78 = arith.negf %77 : vector<8x192xf32>
    %79 = math.exp %78 : vector<8x192xf32>
    %cst_29 = arith.constant 1.000000e+00 : f32
    %80 = vector.broadcast %cst_29 : f32 to vector<8x192xf32>
    %81 = arith.addf %80, %79 : vector<8x192xf32>
    %82 = arith.divf %80, %81 : vector<8x192xf32>
    %83 = vector.extract_strided_slice %76 {offsets = [0, 192], sizes = [8, 64], strides = [1, 1]} : vector<8x256xf32> to vector<8x64xf32>
    %84 = math.tanh %83 : vector<8x64xf32>
    %85 = vector.extract_strided_slice %82 {offsets = [0, 0], sizes = [8, 64], strides = [1, 1]} : vector<8x192xf32> to vector<8x64xf32>
    %86 = vector.extract_strided_slice %82 {offsets = [0, 64], sizes = [8, 64], strides = [1, 1]} : vector<8x192xf32> to vector<8x64xf32>
    %87 = vector.extract_strided_slice %82 {offsets = [0, 128], sizes = [8, 64], strides = [1, 1]} : vector<8x192xf32> to vector<8x64xf32>
    %88 = arith.mulf %86, %69 : vector<8x64xf32>
    %89 = arith.mulf %85, %84 : vector<8x64xf32>
    %90 = arith.addf %88, %89 : vector<8x64xf32>
    %91 = math.tanh %90 : vector<8x64xf32>
    %92 = arith.mulf %87, %91 : vector<8x64xf32>
    %c32 = arith.constant 32 : index
    %c0_30 = arith.constant 0 : index
    %93 = vector.load %arg10[%c32, %c0_30] : memref<80x256xf32, #tpu.memory_space<vmem>>, vector<8x256xf32>
    %94 = arith.truncf %92 : vector<8x64xf32> to vector<8x64xbf16>
    %c0_31 = arith.constant 0 : index
    %c0_32 = arith.constant 0 : index
    %95 = vector.load %arg2[%c0_31, %c0_32] : memref<64x256xbf16, #tpu.memory_space<vmem>>, vector<64x256xbf16>
    %cst_33 = arith.constant dense<0.000000e+00> : vector<8x256xf32>
    %96 = tpu.matmul %94, %95, %cst_33 {dimension_numbers = #tpu.dot_dimension_numbers<[1], [0], [0], [1], [0, 0, 1, 1], [], []>} : vector<8x64xbf16>, vector<64x256xbf16>, vector<8x256xf32> -> vector<8x256xf32>
    %97 = arith.addf %93, %96 : vector<8x256xf32>
    %98 = vector.extract_strided_slice %97 {offsets = [0, 0], sizes = [8, 192], strides = [1, 1]} : vector<8x256xf32> to vector<8x192xf32>
    %99 = arith.negf %98 : vector<8x192xf32>
    %100 = math.exp %99 : vector<8x192xf32>
    %cst_34 = arith.constant 1.000000e+00 : f32
    %101 = vector.broadcast %cst_34 : f32 to vector<8x192xf32>
    %102 = arith.addf %101, %100 : vector<8x192xf32>
    %103 = arith.divf %101, %102 : vector<8x192xf32>
    %104 = vector.extract_strided_slice %97 {offsets = [0, 192], sizes = [8, 64], strides = [1, 1]} : vector<8x256xf32> to vector<8x64xf32>
    %105 = math.tanh %104 : vector<8x64xf32>
    %106 = vector.extract_strided_slice %103 {offsets = [0, 0], sizes = [8, 64], strides = [1, 1]} : vector<8x192xf32> to vector<8x64xf32>
    %107 = vector.extract_strided_slice %103 {offsets = [0, 64], sizes = [8, 64], strides = [1, 1]} : vector<8x192xf32> to vector<8x64xf32>
    %108 = vector.extract_strided_slice %103 {offsets = [0, 128], sizes = [8, 64], strides = [1, 1]} : vector<8x192xf32> to vector<8x64xf32>
    %109 = arith.mulf %107, %90 : vector<8x64xf32>
    %110 = arith.mulf %106, %105 : vector<8x64xf32>
    %111 = arith.addf %109, %110 : vector<8x64xf32>
    %112 = math.tanh %111 : vector<8x64xf32>
    %113 = arith.mulf %108, %112 : vector<8x64xf32>
    %c40 = arith.constant 40 : index
    %c0_35 = arith.constant 0 : index
    %114 = vector.load %arg10[%c40, %c0_35] : memref<80x256xf32, #tpu.memory_space<vmem>>, vector<8x256xf32>
    %115 = arith.truncf %113 : vector<8x64xf32> to vector<8x64xbf16>
    %c0_36 = arith.constant 0 : index
    %c0_37 = arith.constant 0 : index
    %116 = vector.load %arg2[%c0_36, %c0_37] : memref<64x256xbf16, #tpu.memory_space<vmem>>, vector<64x256xbf16>
    %cst_38 = arith.constant dense<0.000000e+00> : vector<8x256xf32>
    %117 = tpu.matmul %115, %116, %cst_38 {dimension_numbers = #tpu.dot_dimension_numbers<[1], [0], [0], [1], [0, 0, 1, 1], [], []>} : vector<8x64xbf16>, vector<64x256xbf16>, vector<8x256xf32> -> vector<8x256xf32>
    %118 = arith.addf %114, %117 : vector<8x256xf32>
    %119 = vector.extract_strided_slice %118 {offsets = [0, 0], sizes = [8, 192], strides = [1, 1]} : vector<8x256xf32> to vector<8x192xf32>
    %120 = arith.negf %119 : vector<8x192xf32>
    %121 = math.exp %120 : vector<8x192xf32>
    %cst_39 = arith.constant 1.000000e+00 : f32
    %122 = vector.broadcast %cst_39 : f32 to vector<8x192xf32>
    %123 = arith.addf %122, %121 : vector<8x192xf32>
    %124 = arith.divf %122, %123 : vector<8x192xf32>
    %125 = vector.extract_strided_slice %118 {offsets = [0, 192], sizes = [8, 64], strides = [1, 1]} : vector<8x256xf32> to vector<8x64xf32>
    %126 = math.tanh %125 : vector<8x64xf32>
    %127 = vector.extract_strided_slice %124 {offsets = [0, 0], sizes = [8, 64], strides = [1, 1]} : vector<8x192xf32> to vector<8x64xf32>
    %128 = vector.extract_strided_slice %124 {offsets = [0, 64], sizes = [8, 64], strides = [1, 1]} : vector<8x192xf32> to vector<8x64xf32>
    %129 = vector.extract_strided_slice %124 {offsets = [0, 128], sizes = [8, 64], strides = [1, 1]} : vector<8x192xf32> to vector<8x64xf32>
    %130 = arith.mulf %128, %111 : vector<8x64xf32>
    %131 = arith.mulf %127, %126 : vector<8x64xf32>
    %132 = arith.addf %130, %131 : vector<8x64xf32>
    %133 = math.tanh %132 : vector<8x64xf32>
    %134 = arith.mulf %129, %133 : vector<8x64xf32>
    %c48 = arith.constant 48 : index
    %c0_40 = arith.constant 0 : index
    %135 = vector.load %arg10[%c48, %c0_40] : memref<80x256xf32, #tpu.memory_space<vmem>>, vector<8x256xf32>
    %136 = arith.truncf %134 : vector<8x64xf32> to vector<8x64xbf16>
    %c0_41 = arith.constant 0 : index
    %c0_42 = arith.constant 0 : index
    %137 = vector.load %arg2[%c0_41, %c0_42] : memref<64x256xbf16, #tpu.memory_space<vmem>>, vector<64x256xbf16>
    %cst_43 = arith.constant dense<0.000000e+00> : vector<8x256xf32>
    %138 = tpu.matmul %136, %137, %cst_43 {dimension_numbers = #tpu.dot_dimension_numbers<[1], [0], [0], [1], [0, 0, 1, 1], [], []>} : vector<8x64xbf16>, vector<64x256xbf16>, vector<8x256xf32> -> vector<8x256xf32>
    %139 = arith.addf %135, %138 : vector<8x256xf32>
    %140 = vector.extract_strided_slice %139 {offsets = [0, 0], sizes = [8, 192], strides = [1, 1]} : vector<8x256xf32> to vector<8x192xf32>
    %141 = arith.negf %140 : vector<8x192xf32>
    %142 = math.exp %141 : vector<8x192xf32>
    %cst_44 = arith.constant 1.000000e+00 : f32
    %143 = vector.broadcast %cst_44 : f32 to vector<8x192xf32>
    %144 = arith.addf %143, %142 : vector<8x192xf32>
    %145 = arith.divf %143, %144 : vector<8x192xf32>
    %146 = vector.extract_strided_slice %139 {offsets = [0, 192], sizes = [8, 64], strides = [1, 1]} : vector<8x256xf32> to vector<8x64xf32>
    %147 = math.tanh %146 : vector<8x64xf32>
    %148 = vector.extract_strided_slice %145 {offsets = [0, 0], sizes = [8, 64], strides = [1, 1]} : vector<8x192xf32> to vector<8x64xf32>
    %149 = vector.extract_strided_slice %145 {offsets = [0, 64], sizes = [8, 64], strides = [1, 1]} : vector<8x192xf32> to vector<8x64xf32>
    %150 = vector.extract_strided_slice %145 {offsets = [0, 128], sizes = [8, 64], strides = [1, 1]} : vector<8x192xf32> to vector<8x64xf32>
    %151 = arith.mulf %149, %132 : vector<8x64xf32>
    %152 = arith.mulf %148, %147 : vector<8x64xf32>
    %153 = arith.addf %151, %152 : vector<8x64xf32>
    %154 = math.tanh %153 : vector<8x64xf32>
    %155 = arith.mulf %150, %154 : vector<8x64xf32>
    %c56 = arith.constant 56 : index
    %c0_45 = arith.constant 0 : index
    %156 = vector.load %arg10[%c56, %c0_45] : memref<80x256xf32, #tpu.memory_space<vmem>>, vector<8x256xf32>
    %157 = arith.truncf %155 : vector<8x64xf32> to vector<8x64xbf16>
    %c0_46 = arith.constant 0 : index
    %c0_47 = arith.constant 0 : index
    %158 = vector.load %arg2[%c0_46, %c0_47] : memref<64x256xbf16, #tpu.memory_space<vmem>>, vector<64x256xbf16>
    %cst_48 = arith.constant dense<0.000000e+00> : vector<8x256xf32>
    %159 = tpu.matmul %157, %158, %cst_48 {dimension_numbers = #tpu.dot_dimension_numbers<[1], [0], [0], [1], [0, 0, 1, 1], [], []>} : vector<8x64xbf16>, vector<64x256xbf16>, vector<8x256xf32> -> vector<8x256xf32>
    %160 = arith.addf %156, %159 : vector<8x256xf32>
    %161 = vector.extract_strided_slice %160 {offsets = [0, 0], sizes = [8, 192], strides = [1, 1]} : vector<8x256xf32> to vector<8x192xf32>
    %162 = arith.negf %161 : vector<8x192xf32>
    %163 = math.exp %162 : vector<8x192xf32>
    %cst_49 = arith.constant 1.000000e+00 : f32
    %164 = vector.broadcast %cst_49 : f32 to vector<8x192xf32>
    %165 = arith.addf %164, %163 : vector<8x192xf32>
    %166 = arith.divf %164, %165 : vector<8x192xf32>
    %167 = vector.extract_strided_slice %160 {offsets = [0, 192], sizes = [8, 64], strides = [1, 1]} : vector<8x256xf32> to vector<8x64xf32>
    %168 = math.tanh %167 : vector<8x64xf32>
    %169 = vector.extract_strided_slice %166 {offsets = [0, 0], sizes = [8, 64], strides = [1, 1]} : vector<8x192xf32> to vector<8x64xf32>
    %170 = vector.extract_strided_slice %166 {offsets = [0, 64], sizes = [8, 64], strides = [1, 1]} : vector<8x192xf32> to vector<8x64xf32>
    %171 = vector.extract_strided_slice %166 {offsets = [0, 128], sizes = [8, 64], strides = [1, 1]} : vector<8x192xf32> to vector<8x64xf32>
    %172 = arith.mulf %170, %153 : vector<8x64xf32>
    %173 = arith.mulf %169, %168 : vector<8x64xf32>
    %174 = arith.addf %172, %173 : vector<8x64xf32>
    %175 = math.tanh %174 : vector<8x64xf32>
    %176 = arith.mulf %171, %175 : vector<8x64xf32>
    %c64 = arith.constant 64 : index
    %c0_50 = arith.constant 0 : index
    %177 = vector.load %arg10[%c64, %c0_50] : memref<80x256xf32, #tpu.memory_space<vmem>>, vector<8x256xf32>
    %178 = arith.truncf %176 : vector<8x64xf32> to vector<8x64xbf16>
    %c0_51 = arith.constant 0 : index
    %c0_52 = arith.constant 0 : index
    %179 = vector.load %arg2[%c0_51, %c0_52] : memref<64x256xbf16, #tpu.memory_space<vmem>>, vector<64x256xbf16>
    %cst_53 = arith.constant dense<0.000000e+00> : vector<8x256xf32>
    %180 = tpu.matmul %178, %179, %cst_53 {dimension_numbers = #tpu.dot_dimension_numbers<[1], [0], [0], [1], [0, 0, 1, 1], [], []>} : vector<8x64xbf16>, vector<64x256xbf16>, vector<8x256xf32> -> vector<8x256xf32>
    %181 = arith.addf %177, %180 : vector<8x256xf32>
    %182 = vector.extract_strided_slice %181 {offsets = [0, 0], sizes = [8, 192], strides = [1, 1]} : vector<8x256xf32> to vector<8x192xf32>
    %183 = arith.negf %182 : vector<8x192xf32>
    %184 = math.exp %183 : vector<8x192xf32>
    %cst_54 = arith.constant 1.000000e+00 : f32
    %185 = vector.broadcast %cst_54 : f32 to vector<8x192xf32>
    %186 = arith.addf %185, %184 : vector<8x192xf32>
    %187 = arith.divf %185, %186 : vector<8x192xf32>
    %188 = vector.extract_strided_slice %181 {offsets = [0, 192], sizes = [8, 64], strides = [1, 1]} : vector<8x256xf32> to vector<8x64xf32>
    %189 = math.tanh %188 : vector<8x64xf32>
    %190 = vector.extract_strided_slice %187 {offsets = [0, 0], sizes = [8, 64], strides = [1, 1]} : vector<8x192xf32> to vector<8x64xf32>
    %191 = vector.extract_strided_slice %187 {offsets = [0, 64], sizes = [8, 64], strides = [1, 1]} : vector<8x192xf32> to vector<8x64xf32>
    %192 = vector.extract_strided_slice %187 {offsets = [0, 128], sizes = [8, 64], strides = [1, 1]} : vector<8x192xf32> to vector<8x64xf32>
    %193 = arith.mulf %191, %174 : vector<8x64xf32>
    %194 = arith.mulf %190, %189 : vector<8x64xf32>
    %195 = arith.addf %193, %194 : vector<8x64xf32>
    %196 = math.tanh %195 : vector<8x64xf32>
    %197 = arith.mulf %192, %196 : vector<8x64xf32>
    %c72 = arith.constant 72 : index
    %c0_55 = arith.constant 0 : index
    %198 = vector.load %arg10[%c72, %c0_55] : memref<80x256xf32, #tpu.memory_space<vmem>>, vector<8x256xf32>
    %199 = arith.truncf %197 : vector<8x64xf32> to vector<8x64xbf16>
    %c0_56 = arith.constant 0 : index
    %c0_57 = arith.constant 0 : index
    %200 = vector.load %arg2[%c0_56, %c0_57] : memref<64x256xbf16, #tpu.memory_space<vmem>>, vector<64x256xbf16>
    %cst_58 = arith.constant dense<0.000000e+00> : vector<8x256xf32>
    %201 = tpu.matmul %199, %200, %cst_58 {dimension_numbers = #tpu.dot_dimension_numbers<[1], [0], [0], [1], [0, 0, 1, 1], [], []>} : vector<8x64xbf16>, vector<64x256xbf16>, vector<8x256xf32> -> vector<8x256xf32>
    %202 = arith.addf %198, %201 : vector<8x256xf32>
    %203 = vector.extract_strided_slice %202 {offsets = [0, 0], sizes = [8, 192], strides = [1, 1]} : vector<8x256xf32> to vector<8x192xf32>
    %204 = arith.negf %203 : vector<8x192xf32>
    %205 = math.exp %204 : vector<8x192xf32>
    %cst_59 = arith.constant 1.000000e+00 : f32
    %206 = vector.broadcast %cst_59 : f32 to vector<8x192xf32>
    %207 = arith.addf %206, %205 : vector<8x192xf32>
    %208 = arith.divf %206, %207 : vector<8x192xf32>
    %209 = vector.extract_strided_slice %202 {offsets = [0, 192], sizes = [8, 64], strides = [1, 1]} : vector<8x256xf32> to vector<8x64xf32>
    %210 = math.tanh %209 : vector<8x64xf32>
    %211 = vector.extract_strided_slice %208 {offsets = [0, 0], sizes = [8, 64], strides = [1, 1]} : vector<8x192xf32> to vector<8x64xf32>
    %212 = vector.extract_strided_slice %208 {offsets = [0, 64], sizes = [8, 64], strides = [1, 1]} : vector<8x192xf32> to vector<8x64xf32>
    %213 = vector.extract_strided_slice %208 {offsets = [0, 128], sizes = [8, 64], strides = [1, 1]} : vector<8x192xf32> to vector<8x64xf32>
    %214 = arith.mulf %212, %195 : vector<8x64xf32>
    %215 = arith.mulf %211, %210 : vector<8x64xf32>
    %216 = arith.addf %214, %215 : vector<8x64xf32>
    %217 = math.tanh %216 : vector<8x64xf32>
    %218 = arith.mulf %213, %217 : vector<8x64xf32>
    %219 = arith.truncf %218 : vector<8x64xf32> to vector<8x64xbf16>
    %c0_60 = arith.constant 0 : index
    %c0_61 = arith.constant 0 : index
    %220 = vector.load %arg5[%c0_60, %c0_61] : memref<64x128xbf16, #tpu.memory_space<vmem>>, vector<64x128xbf16>
    %cst_62 = arith.constant dense<0.000000e+00> : vector<8x128xf32>
    %221 = tpu.matmul %219, %220, %cst_62 {dimension_numbers = #tpu.dot_dimension_numbers<[1], [0], [0], [1], [0, 0, 1, 1], [], []>} : vector<8x64xbf16>, vector<64x128xbf16>, vector<8x128xf32> -> vector<8x128xf32>
    %c0_63 = arith.constant 0 : index
    %c0_64 = arith.constant 0 : index
    %222 = vector.load %arg4[%c0_63, %c0_64] : memref<8x16xbf16, #tpu.memory_space<vmem>>, vector<8x16xbf16>
    %c0_65 = arith.constant 0 : index
    %c0_66 = arith.constant 0 : index
    %223 = vector.load %arg6[%c0_65, %c0_66] : memref<16x128xbf16, #tpu.memory_space<vmem>>, vector<16x128xbf16>
    %cst_67 = arith.constant dense<0.000000e+00> : vector<8x128xf32>
    %224 = tpu.matmul %222, %223, %cst_67 {dimension_numbers = #tpu.dot_dimension_numbers<[1], [0], [0], [1], [0, 0, 1, 1], [], []>} : vector<8x16xbf16>, vector<16x128xbf16>, vector<8x128xf32> -> vector<8x128xf32>
    %225 = arith.addf %221, %224 : vector<8x128xf32>
    %cst_68 = arith.constant 0.000000e+00 : f32
    %226 = vector.broadcast %cst_68 : f32 to vector<8x128xf32>
    %227 = arith.maximumf %225, %226 : vector<8x128xf32>
    %228 = arith.truncf %227 : vector<8x128xf32> to vector<8x128xbf16>
    %c0_69 = arith.constant 0 : index
    %c0_70 = arith.constant 0 : index
    %229 = vector.load %arg7[%c0_69, %c0_70] : memref<128x64xbf16, #tpu.memory_space<vmem>>, vector<128x64xbf16>
    %cst_71 = arith.constant dense<0.000000e+00> : vector<8x64xf32>
    %230 = tpu.matmul %228, %229, %cst_71 {dimension_numbers = #tpu.dot_dimension_numbers<[1], [0], [0], [1], [0, 0, 1, 1], [], []>} : vector<8x128xbf16>, vector<128x64xbf16>, vector<8x64xf32> -> vector<8x64xf32>
    %cst_72 = arith.constant 0.000000e+00 : f32
    %231 = vector.broadcast %cst_72 : f32 to vector<8x64xf32>
    %232 = arith.maximumf %230, %231 : vector<8x64xf32>
    %233 = arith.truncf %232 : vector<8x64xf32> to vector<8x64xbf16>
    %c0_73 = arith.constant 0 : index
    %c0_74 = arith.constant 0 : index
    %234 = vector.load %arg8[%c0_73, %c0_74] : memref<64x128xbf16, #tpu.memory_space<vmem>>, vector<64x128xbf16>
    %cst_75 = arith.constant dense<0.000000e+00> : vector<8x128xf32>
    %235 = tpu.matmul %233, %234, %cst_75 {dimension_numbers = #tpu.dot_dimension_numbers<[1], [0], [0], [1], [0, 0, 1, 1], [], []>} : vector<8x64xbf16>, vector<64x128xbf16>, vector<8x128xf32> -> vector<8x128xf32>
    %236 = arith.negf %235 : vector<8x128xf32>
    %237 = math.exp %236 : vector<8x128xf32>
    %cst_76 = arith.constant 1.000000e+00 : f32
    %238 = vector.broadcast %cst_76 : f32 to vector<8x128xf32>
    %239 = arith.addf %238, %237 : vector<8x128xf32>
    %240 = arith.divf %238, %239 : vector<8x128xf32>
    %c0_77 = arith.constant 0 : index
    %c0_78 = arith.constant 0 : index
    %241 = vector.load %arg9[%c0_77, %c0_78] : memref<8x128xf32, #tpu.memory_space<vmem>>, vector<8x128xf32>
    tpu.vector_store %arg9[%c0_77, %c0_78], %240 {strides = array<i32>} : memref<8x128xf32, #tpu.memory_space<vmem>>, vector<8x128xf32>,
    return
  }
}

</mosaic_0001>

<llo_original>
// kernel: tpu_custom_call.1
$region0: #{tpu_custom_call.1}
  #allocation0 [shape = 'u32[]', space=smem, size = 0x4, offset = 0x4, fixed_abs, tag = 'smem constant byte address 0x4 - core index']
  #allocation1 [shape = 'u32[144,128]{1,0:T(1,128)}', space=vmem, size = 0x12000, scoped, tag = 'internal scratch']
  #allocation2 [shape = 'f32[80,256]{1,0:T(8,128)}', space=vmem, size = 0x14000, scoped, tag = 'scratch operand']
  %s0 = inlined_call_operand.vmem [shape: bf16[80,32], index: 0, kind: input, shape index: {}]
  %s1 = inlined_call_operand.vmem [shape: bf16[32,256], index: 1, kind: input, shape index: {}]
  %s2 = inlined_call_operand.vmem [shape: bf16[64,256], index: 2, kind: input, shape index: {}]
  %s3 = inlined_call_operand.hbm [shape: f32[1,256], index: 3, kind: input, shape index: {}]
  %s4 = inlined_call_operand.hbm [shape: bf16[8,16], index: 4, kind: input, shape index: {}]
  %s5 = inlined_call_operand.vmem [shape: bf16[64,128], index: 5, kind: input, shape index: {}]
  %s6 = inlined_call_operand.hbm [shape: bf16[16,128], index: 6, kind: input, shape index: {}]
  %s7 = inlined_call_operand.vmem [shape: bf16[128,64], index: 7, kind: input, shape index: {}]
  %s8 = inlined_call_operand.vmem [shape: bf16[64,128], index: 8, kind: input, shape index: {}]
  %s9 = inlined_call_operand.hbm [shape: f32[8,128], index: 9, kind: output, shape index: {}]
  %s10 = sld [smem:[#allocation0]]
  $region58: #{tpu_custom_call.1} parent=0
    _
  %s12 = ssub.s32 1, %s10
  %s13 = scalar_select 0, %s12, %s10
  $region1: #{tpu_custom_call.1} parent=0
    #allocation3 [shape = 'u8[1024]{0}', space=vmem, size = 0x400, scoped, tag = 'input window, operand 3, single buffered']
    #allocation4 [shape = 's32[1]{0}', space=sflag, size = 0x4, scoped, tag = 'scoped memory for tpu_custom_call.1']
    #allocation5 [shape = 's32[1]{0}', space=sflag, size = 0x4, scoped, tag = 'scoped memory for tpu_custom_call.1']
    #allocation6 [shape = 'u8[2048]{0}', space=vmem, size = 0x800, scoped, tag = 'input window, operand 4, single buffered']
    #allocation7 [shape = 's32[1]{0}', space=sflag, size = 0x4, scoped, tag = 'scoped memory for tpu_custom_call.1']
    #allocation8 [shape = 'u8[4096]{0}', space=vmem, size = 0x1000, scoped, tag = 'input window, operand 6, single buffered']
    #allocation9 [shape = 'u8[4096]{0}', space=vmem, size = 0x1000, scoped, tag = 'output window, operand 0, single buffered']
    %14 = vsyncpa [#allocation4], 0
    %15 = vsyncpa [#allocation7], 0
    %16 = vsyncpa [#allocation5], 0
    // Predicated region
    $region2: #{tpu_custom_call.1} parent=1 // pred_check
      _
    $region3: #{tpu_custom_call.1} parent=1 // pred_check_branch
      %18 = sbr.rel (0) target = $region5
    $region4: #{tpu_custom_call.1} parent=1 // pred_region
      _
    $region5: #{tpu_custom_call.1} parent=1 // pred_fallthru
      _
    // Predicated region
    $region6: #{tpu_custom_call.1} parent=1 // pred_check
      _
    $region7: #{tpu_custom_call.1} parent=1 // pred_check_branch
      %20 = sbr.rel (0) target = $region9
    $region8: #{tpu_custom_call.1} parent=1 // pred_region
      _
    $region9: #{tpu_custom_call.1} parent=1 // pred_fallthru
      _
    // Predicated region
    $region10: #{tpu_custom_call.1} parent=1 // pred_check
      _
    $region11: #{tpu_custom_call.1} parent=1 // pred_check_branch
      %22 = sbr.rel (0) target = $region13
    $region12: #{tpu_custom_call.1} parent=1 // pred_region
      _
    $region13: #{tpu_custom_call.1} parent=1 // pred_fallthru
      _
    // Predicated region
    $region14: #{tpu_custom_call.1} parent=1 // pred_check
      _
    $region15: #{tpu_custom_call.1} parent=1 // pred_check_branch
      %24 = sbr.rel (0) target = $region17
    $region16: #{tpu_custom_call.1} parent=1 // pred_region
      %s26 = ssub.s32 32, 32
      %27 = vsyncadd [#allocation4], %s26
      %s29 = sshll.u32 [#allocation3], 4
      %s30 = int_to_ptr.vmem [resolvable:$true] %s29
      %32 = dma.hbm_to_vmem [thread:$0]  %s3, 32, %s30, [#allocation4]
    $region17: #{tpu_custom_call.1} parent=1 // pred_fallthru
      _
    // Predicated region
    $region18: #{tpu_custom_call.1} parent=1 // pred_check
      _
    $region19: #{tpu_custom_call.1} parent=1 // pred_check_branch
      %34 = sbr.rel (0) target = $region21
    $region20: #{tpu_custom_call.1} parent=1 // pred_region
      %s36 = ssub.s32 64, 64
      %37 = vsyncadd [#allocation7], %s36
      %s39 = sshll.u32 [#allocation6], 4
      %s40 = int_to_ptr.vmem [resolvable:$true] %s39
      %42 = dma.hbm_to_vmem [thread:$0]  %s4, 64, %s40, [#allocation7]
    $region21: #{tpu_custom_call.1} parent=1 // pred_fallthru
      _
    // Predicated region
    $region22: #{tpu_custom_call.1} parent=1 // pred_check
      _
    $region23: #{tpu_custom_call.1} parent=1 // pred_check_branch
      %44 = sbr.rel (0) target = $region25
    $region24: #{tpu_custom_call.1} parent=1 // pred_region
      _
    $region25: #{tpu_custom_call.1} parent=1 // pred_fallthru
      _
    // Predicated region
    $region26: #{tpu_custom_call.1} parent=1 // pred_check
      _
    $region27: #{tpu_custom_call.1} parent=1 // pred_check_branch
      %46 = sbr.rel (0) target = $region29
    $region28: #{tpu_custom_call.1} parent=1 // pred_region
      %s48 = ssub.s32 128, 128
      %49 = vsyncadd [#allocation7], %s48
      %s50 = sshll.u32 [#allocation8], 4
      %s51 = int_to_ptr.vmem [resolvable:$true] %s50
      %56 = dma.hbm_to_vmem [thread:$0]  %s6, 128, %s51, [#allocation7], 64, 64, 4
    $region29: #{tpu_custom_call.1} parent=1 // pred_fallthru
      _
    // Predicated region
    $region30: #{tpu_custom_call.1} parent=1 // pred_check
      _
    $region31: #{tpu_custom_call.1} parent=1 // pred_check_branch
      %58 = sbr.rel (0) target = $region33
    $region32: #{tpu_custom_call.1} parent=1 // pred_region
      _
    $region33: #{tpu_custom_call.1} parent=1 // pred_fallthru
      _
    // Predicated region
    $region34: #{tpu_custom_call.1} parent=1 // pred_check
      _
    $region35: #{tpu_custom_call.1} parent=1 // pred_check_branch
      %60 = sbr.rel (0) target = $region37
    $region36: #{tpu_custom_call.1} parent=1 // pred_region
      _
    $region37: #{tpu_custom_call.1} parent=1 // pred_fallthru
      _
    // Predicated region
    $region38: #{tpu_custom_call.1} parent=1 // pred_check
      _
    $region39: #{tpu_custom_call.1} parent=1 // pred_check_branch
      %62 = sbr.rel (0) target = $region41
    $region40: #{tpu_custom_call.1} parent=1 // pred_region
      %63 = dma.done [#allocation4], 32
    $region41: #{tpu_custom_call.1} parent=1 // pred_fallthru
      _
    // Predicated region
    $region42: #{tpu_custom_call.1} parent=1 // pred_check
      _
    $region43: #{tpu_custom_call.1} parent=1 // pred_check_branch
      %65 = sbr.rel (0) target = $region45
    $region44: #{tpu_custom_call.1} parent=1 // pred_region
      %66 = dma.done [#allocation7], 64
    $region45: #{tpu_custom_call.1} parent=1 // pred_fallthru
      _
    // Predicated region
    $region46: #{tpu_custom_call.1} parent=1 // pred_check
      _
    $region47: #{tpu_custom_call.1} parent=1 // pred_check_branch
      %68 = sbr.rel (0) target = $region49
    $region48: #{tpu_custom_call.1} parent=1 // pred_region
      %69 = dma.done [#allocation7], 128
    $region49: #{tpu_custom_call.1} parent=1 // pred_fallthru
      _
    %v71 = vld [vmem:[%s0] sm:$0xf]
    %v72 = vld [vmem:[%s0 + $0x4] sm:$0xf]
    %v73 = vld [vmem:[%s0 + $0x8] sm:$0xf]
    %v74 = vld [vmem:[%s0 + $0xc] sm:$0xf]
    %v75 = vld [vmem:[%s0 + $0x10] sm:$0xf]
    %v76 = vld [vmem:[%s0 + $0x14] sm:$0xf]
    %v77 = vld [vmem:[%s0 + $0x18] sm:$0xf]
    %v78 = vld [vmem:[%s0 + $0x1c] sm:$0xf]
    %v79 = vld [vmem:[%s0 + $0x20] sm:$0xf]
    %v80 = vld [vmem:[%s0 + $0x24] sm:$0xf]
    %v81 = vld [vmem:[%s1] sm:$0xff]
    %v82 = vld [vmem:[%s1 + $0x8] sm:$0xff]
    %v83 = vld [vmem:[%s1 + $0x10] sm:$0xff]
    %v84 = vld [vmem:[%s1 + $0x18] sm:$0xff]
    %v85 = vld [vmem:[#allocation3] sm:$0x3]
    %v87 = vlaneseq
    %v88 = vshrl.u32 %v87, 7
    %v89 = vsub.s32 0, %v88
    %v90 = vrot.slane %v85, %v89
    %v91 = vlaneseq
    %v92 = vshrl.u32 %v91, 7
    %v93 = vsub.s32 1, %v92
    %v94 = vrot.slane %v85, %v93
    %v107 = vunpack.c.l.b16 %v71
    %v108 = vunpack.c.l.b16 %v72
    %v109 = vunpack.c.l.b16 %v73
    %v110 = vunpack.c.l.b16 %v74
    %v111 = vunpack.c.l.b16 %v75
    %v112 = vunpack.c.l.b16 %v76
    %v113 = vunpack.c.l.b16 %v77
    %v114 = vunpack.c.l.b16 %v78
    %v115 = vunpack.c.l.b16 %v79
    %v116 = vunpack.c.l.b16 %v80
    %v117 = vpack.c.b16 %v108, %v107
    %v118 = vpack.c.b16 %v110, %v109
    %v119 = vpack.c.b16 %v112, %v111
    %v120 = vpack.c.b16 %v114, %v113
    %v121 = vpack.c.b16 %v116, %v115
    %v126 = vunpack.c.l.b16 %v81
    %v127 = vunpack.c.h.b16 %v81
    %v128 = vunpack.c.l.b16 %v82
    %v129 = vunpack.c.h.b16 %v82
    %v130 = vunpack.c.l.b16 %v83
    %v131 = vunpack.c.h.b16 %v83
    %v132 = vunpack.c.l.b16 %v84
    %v133 = vunpack.c.h.b16 %v84
    %v134 = vpack.c.b16 %v128, %v126
    %v135 = vpack.c.b16 %v129, %v127
    %v136 = vpack.c.b16 %v132, %v130
    %v137 = vpack.c.b16 %v133, %v131
    %vm142 = vcmask 261120
    %v144 = vsel %vm142, %v117, 0
    %v147 = vsel %vm142, %v118, 0
    %v150 = vsel %vm142, %v119, 0
    %v153 = vsel %vm142, %v120, 0
    %v156 = vsel %vm142, %v121, 0
    %158 = vmatprep.subr.bf16.mxu0 0
    %159 = vmatpush1.bf16.msra.mxu0 0
    %160 = vmatprep.subr.bf16.mxu0 0
    %161 = vmatpush1.bf16.msra.mxu0 0
    %162 = vmatprep.subr.bf16.mxu0 0
    %163 = vmatpush1.bf16.msra.mxu0 0
    %164 = vmatprep.subr.bf16.mxu0 0
    %165 = vmatpush1.bf16.msra.mxu0 0
    %166 = vmatprep.subr.bf16.mxu0 0
    %167 = vmatpush1.bf16.msra.mxu0 0
    %168 = vmatprep.subr.bf16.mxu0 0
    %169 = vmatpush1.bf16.msra.mxu0 0
    %170 = vmatprep.subr.bf16.mxu0 %v137
    %171 = vmatpush1.bf16.msra.mxu0 %v136
    %172 = vmatprep.subr.bf16.mxu0 %v135
    %173 = vmatpush1.bf16.msra.mxu0 %v134
    %174 = vmatprep.subr.bf16.mxu0 0
    %175 = vmatpush2.bf16.msra.mxu0 0
    %176 = vmatprep.subr.bf16.mxu0 0
    %177 = vmatpush2.bf16.msra.mxu0 0
    %178 = vmatprep.subr.bf16.mxu0 0
    %179 = vmatpush2.bf16.msra.mxu0 0
    %180 = vmatprep.subr.bf16.mxu0 0
    %181 = vmatpush2.bf16.msra.mxu0 0
    %182 = vmatprep.subr.bf16.mxu0 0
    %183 = vmatpush2.bf16.msra.mxu0 0
    %184 = vmatprep.subr.bf16.mxu0 0
    %185 = vmatpush2.bf16.msra.mxu0 0
    %186 = vmatprep.subr.bf16.mxu0 0
    %187 = vmatpush2.bf16.msra.mxu0 0
    %188 = vmatprep.subr.bf16.mxu0 0
    %189 = vmatpush2.bf16.msra.mxu0 0
    %190 = vmatprep.mubr.bf16.mxu0 0
    %191 = vmatmul.mubr.bf16.gmra.mxu0 %v144
    %v192 = vpop.f32.mrf.mxu0
    %v193 = vadd.f32 %v90, %v192
    %v194 = vpop.f32.mrf.mxu0
    %v195 = vadd.f32 %v94, %v194
    %v196 = vpop.f32.mrf.mxu0
    %v197 = vadd.f32 %v90, %v196
    %v198 = vpop.f32.mrf.mxu0
    %v199 = vadd.f32 %v94, %v198
    %200 = vmatprep.mubr.bf16.mxu0 0
    %201 = vmatmul.mubr.bf16.gmra.mxu0 %v147
    %v202 = vpop.f32.mrf.mxu0
    %v203 = vadd.f32 %v90, %v202
    %v204 = vpop.f32.mrf.mxu0
    %v205 = vadd.f32 %v94, %v204
    %v206 = vpop.f32.mrf.mxu0
    %v207 = vadd.f32 %v90, %v206
    %v208 = vpop.f32.mrf.mxu0
    %v209 = vadd.f32 %v94, %v208
    %210 = vmatprep.mubr.bf16.mxu0 0
    %211 = vmatmul.mubr.bf16.gmra.mxu0 %v150
    %v212 = vpop.f32.mrf.mxu0
    %v213 = vadd.f32 %v90, %v212
    %v214 = vpop.f32.mrf.mxu0
    %v215 = vadd.f32 %v94, %v214
    %v216 = vpop.f32.mrf.mxu0
    %v217 = vadd.f32 %v90, %v216
    %v218 = vpop.f32.mrf.mxu0
    %v219 = vadd.f32 %v94, %v218
    %220 = vmatprep.mubr.bf16.mxu0 0
    %221 = vmatmul.mubr.bf16.gmra.mxu0 %v153
    %v222 = vpop.f32.mrf.mxu0
    %v223 = vadd.f32 %v90, %v222
    %v224 = vpop.f32.mrf.mxu0
    %v225 = vadd.f32 %v94, %v224
    %v226 = vpop.f32.mrf.mxu0
    %v227 = vadd.f32 %v90, %v226
    %v228 = vpop.f32.mrf.mxu0
    %v229 = vadd.f32 %v94, %v228
    %230 = vmatprep.mubr.bf16.mxu0 0
    %231 = vmatmul.mubr.bf16.gmra.mxu0 %v156
    %v232 = vpop.f32.mrf.mxu0
    %v233 = vadd.f32 %v90, %v232
    %v234 = vpop.f32.mrf.mxu0
    %v235 = vadd.f32 %v94, %v234
    %v236 = vpop.f32.mrf.mxu0
    %v237 = vadd.f32 %v90, %v236
    %v238 = vpop.f32.mrf.mxu0
    %v239 = vadd.f32 %v94, %v238
    %240 = vdwg.mxu0
    %241 = vst [vmem:[#allocation2] sm:$0xff] %v193
    %242 = vst [vmem:[#allocation2 + $0x8] sm:$0xff] %v195
    %243 = vst [vmem:[#allocation2 + $0x10] sm:$0xff] %v197
    %244 = vst [vmem:[#allocation2 + $0x18] sm:$0xff] %v199
    %245 = vst [vmem:[#allocation2 + $0x20] sm:$0xff] %v203
    %246 = vst [vmem:[#allocation2 + $0x28] sm:$0xff] %v205
    %247 = vst [vmem:[#allocation2 + $0x30] sm:$0xff] %v207
    %248 = vst [vmem:[#allocation2 + $0x38] sm:$0xff] %v209
    %249 = vst [vmem:[#allocation2 + $0x40] sm:$0xff] %v213
    %250 = vst [vmem:[#allocation2 + $0x48] sm:$0xff] %v215
    %251 = vst [vmem:[#allocation2 + $0x50] sm:$0xff] %v217
    %252 = vst [vmem:[#allocation2 + $0x58] sm:$0xff] %v219
    %253 = vst [vmem:[#allocation2 + $0x60] sm:$0xff] %v223
    %254 = vst [vmem:[#allocation2 + $0x68] sm:$0xff] %v225
    %255 = vst [vmem:[#allocation2 + $0x70] sm:$0xff] %v227
    %256 = vst [vmem:[#allocation2 + $0x78] sm:$0xff] %v229
    %257 = vst [vmem:[#allocation2 + $0x80] sm:$0xff] %v233
    %258 = vst [vmem:[#allocation2 + $0x88] sm:$0xff] %v235
    %259 = vst [vmem:[#allocation2 + $0x90] sm:$0xff] %v237
    %260 = vst [vmem:[#allocation2 + $0x98] sm:$0xff] %v239
    %v261 = vld [vmem:[#allocation2] sm:$0xff]
    %v262 = vld [vmem:[#allocation2 + $0x8] sm:$0xff]
    %v263 = vld [vmem:[%s2] sm:$0xff]
    %v264 = vld [vmem:[%s2 + $0x8] sm:$0xff]
    %v265 = vld [vmem:[%s2 + $0x10] sm:$0xff]
    %v266 = vld [vmem:[%s2 + $0x18] sm:$0xff]
    %v267 = vld [vmem:[%s2 + $0x20] sm:$0xff]
    %v268 = vld [vmem:[%s2 + $0x28] sm:$0xff]
    %v269 = vld [vmem:[%s2 + $0x30] sm:$0xff]
    %v270 = vld [vmem:[%s2 + $0x38] sm:$0xff]
    %v279 = vunpack.c.l.b16 %v263
    %v280 = vunpack.c.h.b16 %v263
    %v281 = vunpack.c.l.b16 %v264
    %v282 = vunpack.c.h.b16 %v264
    %v283 = vunpack.c.l.b16 %v265
    %v284 = vunpack.c.h.b16 %v265
    %v285 = vunpack.c.l.b16 %v266
    %v286 = vunpack.c.h.b16 %v266
    %v287 = vunpack.c.l.b16 %v267
    %v288 = vunpack.c.h.b16 %v267
    %v289 = vunpack.c.l.b16 %v268
    %v290 = vunpack.c.h.b16 %v268
    %v291 = vunpack.c.l.b16 %v269
    %v292 = vunpack.c.h.b16 %v269
    %v293 = vunpack.c.l.b16 %v270
    %v294 = vunpack.c.h.b16 %v270
    %v295 = vpack.c.b16 %v281, %v279
    %v296 = vpack.c.b16 %v282, %v280
    %v297 = vpack.c.b16 %v285, %v283
    %v298 = vpack.c.b16 %v286, %v284
    %v299 = vpack.c.b16 %v289, %v287
    %v300 = vpack.c.b16 %v290, %v288
    %v301 = vpack.c.b16 %v293, %v291
    %v302 = vpack.c.b16 %v294, %v292
    %vm311 = vcmask 523264
    %v313 = vsel %vm311, 0, 0
    %315 = vmatprep.subr.bf16.mxu0 0
    %316 = vmatpush1.bf16.msra.mxu0 0
    %317 = vmatprep.subr.bf16.mxu0 0
    %318 = vmatpush1.bf16.msra.mxu0 0
    %319 = vmatprep.subr.bf16.mxu0 0
    %320 = vmatpush1.bf16.msra.mxu0 0
    %321 = vmatprep.subr.bf16.mxu0 0
    %322 = vmatpush1.bf16.msra.mxu0 0
    %323 = vmatprep.subr.bf16.mxu0 %v302
    %324 = vmatpush1.bf16.msra.mxu0 %v301
    %325 = vmatprep.subr.bf16.mxu0 %v300
    %326 = vmatpush1.bf16.msra.mxu0 %v299
    %327 = vmatprep.subr.bf16.mxu0 %v298
    %328 = vmatpush1.bf16.msra.mxu0 %v297
    %329 = vmatprep.subr.bf16.mxu0 %v296
    %330 = vmatpush1.bf16.msra.mxu0 %v295
    %331 = vmatprep.subr.bf16.mxu0 0
    %332 = vmatpush2.bf16.msra.mxu0 0
    %333 = vmatprep.subr.bf16.mxu0 0
    %334 = vmatpush2.bf16.msra.mxu0 0
    %335 = vmatprep.subr.bf16.mxu0 0
    %336 = vmatpush2.bf16.msra.mxu0 0
    %337 = vmatprep.subr.bf16.mxu0 0
    %338 = vmatpush2.bf16.msra.mxu0 0
    %339 = vmatprep.subr.bf16.mxu0 0
    %340 = vmatpush2.bf16.msra.mxu0 0
    %341 = vmatprep.subr.bf16.mxu0 0
    %342 = vmatpush2.bf16.msra.mxu0 0
    %343 = vmatprep.subr.bf16.mxu0 0
    %344 = vmatpush2.bf16.msra.mxu0 0
    %345 = vmatprep.subr.bf16.mxu0 0
    %346 = vmatpush2.bf16.msra.mxu0 0
    %347 = vmatprep.mubr.bf16.mxu0 0
    %348 = vmatmul.mubr.bf16.gmra.mxu0 %v313
    %v349 = vpop.f32.mrf.mxu0
    %v350 = vadd.f32 0.0, %v349
    %v351 = vpop.f32.mrf.mxu0
    %v352 = vadd.f32 0.0, %v351
    %v353 = vpop.f32.mrf.mxu0
    %v354 = vpop.f32.mrf.mxu0
    %355 = vdwg.mxu0
    %v356 = vadd.f32 %v261, %v350
    %v357 = vadd.f32 %v262, %v352
    %v358 = vxor.u32 %v356, 2147483648
    %v359 = vxor.u32 %v357, 2147483648
    %v360 = vmul.f32 %v358, 1.442695
    %v361 = vpow.pop %v360
    %v362 = vmul.f32 %v359, 1.442695
    %v363 = vpow.pop %v362
    %v364 = vadd.f32 %v361, 1.0
    %v365 = vadd.f32 %v363, 1.0
    %v366 = vrcp.pop %v364
    %v367 = vmul.f32 1.0, %v366
    %v368 = vrcp.pop %v365
    %v369 = vmul.f32 1.0, %v368
    %v370 = vtanh.pop %v357
    %v371 = vmul.f32 %v367, 0.0
    %373 = vrot.lane.b32.xlu0 %v370, 64
    %v374 = vpop.permute.xlu0 %373
    %v376 = vmul.f32 %v367, %v374
    %378 = vrot.lane.b32.xlu0 %v376, 64
    %v379 = vpop.permute.xlu0 %378
    %v381 = vadd.f32 %v371, %v379
    %v382 = vtanh.pop %v381
    %384 = vrot.lane.b32.xlu0 %v382, 64
    %v385 = vpop.permute.xlu0 %384
    %v387 = vmul.f32 %v369, %v385
    %v388 = vld [vmem:[#allocation2 + $0x10] sm:$0xff]
    %v389 = vld [vmem:[#allocation2 + $0x18] sm:$0xff]
    %v390 = vpack.c.bf16 %v387, %v387
    %v392 = vsel %vm311, %v390, 0
    %394 = vmatprep.subr.bf16.mxu0 0
    %395 = vmatpush1.bf16.msra.mxu0 0
    %396 = vmatprep.subr.bf16.mxu0 0
    %397 = vmatpush1.bf16.msra.mxu0 0
    %398 = vmatprep.subr.bf16.mxu0 0
    %399 = vmatpush1.bf16.msra.mxu0 0
    %400 = vmatprep.subr.bf16.mxu0 0
    %401 = vmatpush1.bf16.msra.mxu0 0
    %402 = vmatprep.subr.bf16.mxu0 %v302
    %403 = vmatpush1.bf16.msra.mxu0 %v301
    %404 = vmatprep.subr.bf16.mxu0 %v300
    %405 = vmatpush1.bf16.msra.mxu0 %v299
    %406 = vmatprep.subr.bf16.mxu0 %v298
    %407 = vmatpush1.bf16.msra.mxu0 %v297
    %408 = vmatprep.subr.bf16.mxu0 %v296
    %409 = vmatpush1.bf16.msra.mxu0 %v295
    %410 = vmatprep.subr.bf16.mxu0 0
    %411 = vmatpush2.bf16.msra.mxu0 0
    %412 = vmatprep.subr.bf16.mxu0 0
    %413 = vmatpush2.bf16.msra.mxu0 0
    %414 = vmatprep.subr.bf16.mxu0 0
    %415 = vmatpush2.bf16.msra.mxu0 0
    %416 = vmatprep.subr.bf16.mxu0 0
    %417 = vmatpush2.bf16.msra.mxu0 0
    %418 = vmatprep.subr.bf16.mxu0 0
    %419 = vmatpush2.bf16.msra.mxu0 0
    %420 = vmatprep.subr.bf16.mxu0 0
    %421 = vmatpush2.bf16.msra.mxu0 0
    %422 = vmatprep.subr.bf16.mxu0 0
    %423 = vmatpush2.bf16.msra.mxu0 0
    %424 = vmatprep.subr.bf16.mxu0 0
    %425 = vmatpush2.bf16.msra.mxu0 0
    %426 = vmatprep.mubr.bf16.mxu0 0
    %427 = vmatmul.mubr.bf16.gmra.mxu0 %v392
    %v428 = vpop.f32.mrf.mxu0
    %v429 = vadd.f32 0.0, %v428
    %v430 = vpop.f32.mrf.mxu0
    %v431 = vadd.f32 0.0, %v430
    %v432 = vpop.f32.mrf.mxu0
    %v433 = vpop.f32.mrf.mxu0
    %434 = vdwg.mxu0
    %v435 = vadd.f32 %v388, %v429
    %v436 = vadd.f32 %v389, %v431
    %v437 = vxor.u32 %v435, 2147483648
    %v438 = vxor.u32 %v436, 2147483648
    %v439 = vmul.f32 %v437, 1.442695
    %v440 = vpow.pop %v439
    %v441 = vmul.f32 %v438, 1.442695
    %v442 = vpow.pop %v441
    %v443 = vadd.f32 %v440, 1.0
    %v444 = vadd.f32 %v442, 1.0
    %v445 = vrcp.pop %v443
    %v446 = vmul.f32 1.0, %v445
    %v447 = vrcp.pop %v444
    %v448 = vmul.f32 1.0, %v447
    %v449 = vtanh.pop %v436
    %v450 = vmul.f32 %v446, %v381
    %452 = vrot.lane.b32.xlu0 %v449, 64
    %v453 = vpop.permute.xlu0 %452
    %v455 = vmul.f32 %v446, %v453
    %457 = vrot.lane.b32.xlu0 %v455, 64
    %v458 = vpop.permute.xlu0 %457
    %v460 = vadd.f32 %v450, %v458
    %v461 = vtanh.pop %v460
    %463 = vrot.lane.b32.xlu0 %v461, 64
    %v464 = vpop.permute.xlu0 %463
    %v466 = vmul.f32 %v448, %v464
    %v467 = vld [vmem:[#allocation2 + $0x20] sm:$0xff]
    %v468 = vld [vmem:[#allocation2 + $0x28] sm:$0xff]
    %v469 = vpack.c.bf16 %v466, %v466
    %v471 = vsel %vm311, %v469, 0
    %473 = vmatprep.subr.bf16.mxu0 0
    %474 = vmatpush1.bf16.msra.mxu0 0
    %475 = vmatprep.subr.bf16.mxu0 0
    %476 = vmatpush1.bf16.msra.mxu0 0
    %477 = vmatprep.subr.bf16.mxu0 0
    %478 = vmatpush1.bf16.msra.mxu0 0
    %479 = vmatprep.subr.bf16.mxu0 0
    %480 = vmatpush1.bf16.msra.mxu0 0
    %481 = vmatprep.subr.bf16.mxu0 %v302
    %482 = vmatpush1.bf16.msra.mxu0 %v301
    %483 = vmatprep.subr.bf16.mxu0 %v300
    %484 = vmatpush1.bf16.msra.mxu0 %v299
    %485 = vmatprep.subr.bf16.mxu0 %v298
    %486 = vmatpush1.bf16.msra.mxu0 %v297
    %487 = vmatprep.subr.bf16.mxu0 %v296
    %488 = vmatpush1.bf16.msra.mxu0 %v295
    %489 = vmatprep.subr.bf16.mxu0 0
    %490 = vmatpush2.bf16.msra.mxu0 0
    %491 = vmatprep.subr.bf16.mxu0 0
    %492 = vmatpush2.bf16.msra.mxu0 0
    %493 = vmatprep.subr.bf16.mxu0 0
    %494 = vmatpush2.bf16.msra.mxu0 0
    %495 = vmatprep.subr.bf16.mxu0 0
    %496 = vmatpush2.bf16.msra.mxu0 0
    %497 = vmatprep.subr.bf16.mxu0 0
    %498 = vmatpush2.bf16.msra.mxu0 0
    %499 = vmatprep.subr.bf16.mxu0 0
    %500 = vmatpush2.bf16.msra.mxu0 0
    %501 = vmatprep.subr.bf16.mxu0 0
    %502 = vmatpush2.bf16.msra.mxu0 0
    %503 = vmatprep.subr.bf16.mxu0 0
    %504 = vmatpush2.bf16.msra.mxu0 0
    %505 = vmatprep.mubr.bf16.mxu0 0
    %506 = vmatmul.mubr.bf16.gmra.mxu0 %v471
    %v507 = vpop.f32.mrf.mxu0
    %v508 = vadd.f32 0.0, %v507
    %v509 = vpop.f32.mrf.mxu0
    %v510 = vadd.f32 0.0, %v509
    %v511 = vpop.f32.mrf.mxu0
    %v512 = vpop.f32.mrf.mxu0
    %513 = vdwg.mxu0
    %v514 = vadd.f32 %v467, %v508
    %v515 = vadd.f32 %v468, %v510
    %v516 = vxor.u32 %v514, 2147483648
    %v517 = vxor.u32 %v515, 2147483648
    %v518 = vmul.f32 %v516, 1.442695
    %v519 = vpow.pop %v518
    %v520 = vmul.f32 %v517, 1.442695
    %v521 = vpow.pop %v520
    %v522 = vadd.f32 %v519, 1.0
    %v523 = vadd.f32 %v521, 1.0
    %v524 = vrcp.pop %v522
    %v525 = vmul.f32 1.0, %v524
    %v526 = vrcp.pop %v523
    %v527 = vmul.f32 1.0, %v526
    %v528 = vtanh.pop %v515
    %v529 = vmul.f32 %v525, %v460
    %531 = vrot.lane.b32.xlu0 %v528, 64
    %v532 = vpop.permute.xlu0 %531
    %v534 = vmul.f32 %v525, %v532
    %536 = vrot.lane.b32.xlu0 %v534, 64
    %v537 = vpop.permute.xlu0 %536
    %v539 = vadd.f32 %v529, %v537
    %v540 = vtanh.pop %v539
    %542 = vrot.lane.b32.xlu0 %v540, 64
    %v543 = vpop.permute.xlu0 %542
    %v545 = vmul.f32 %v527, %v543
    %v546 = vld [vmem:[#allocation2 + $0x30] sm:$0xff]
    %v547 = vld [vmem:[#allocation2 + $0x38] sm:$0xff]
    %v548 = vpack.c.bf16 %v545, %v545
    %v550 = vsel %vm311, %v548, 0
    %552 = vmatprep.subr.bf16.mxu0 0
    %553 = vmatpush1.bf16.msra.mxu0 0
    %554 = vmatprep.subr.bf16.mxu0 0
    %555 = vmatpush1.bf16.msra.mxu0 0
    %556 = vmatprep.subr.bf16.mxu0 0
    %557 = vmatpush1.bf16.msra.mxu0 0
    %558 = vmatprep.subr.bf16.mxu0 0
    %559 = vmatpush1.bf16.msra.mxu0 0
    %560 = vmatprep.subr.bf16.mxu0 %v302
    %561 = vmatpush1.bf16.msra.mxu0 %v301
    %562 = vmatprep.subr.bf16.mxu0 %v300
    %563 = vmatpush1.bf16.msra.mxu0 %v299
    %564 = vmatprep.subr.bf16.mxu0 %v298
    %565 = vmatpush1.bf16.msra.mxu0 %v297
    %566 = vmatprep.subr.bf16.mxu0 %v296
    %567 = vmatpush1.bf16.msra.mxu0 %v295
    %568 = vmatprep.subr.bf16.mxu0 0
    %569 = vmatpush2.bf16.msra.mxu0 0
    %570 = vmatprep.subr.bf16.mxu0 0
    %571 = vmatpush2.bf16.msra.mxu0 0
    %572 = vmatprep.subr.bf16.mxu0 0
    %573 = vmatpush2.bf16.msra.mxu0 0
    %574 = vmatprep.subr.bf16.mxu0 0
    %575 = vmatpush2.bf16.msra.mxu0 0
    %576 = vmatprep.subr.bf16.mxu0 0
    %577 = vmatpush2.bf16.msra.mxu0 0
    %578 = vmatprep.subr.bf16.mxu0 0
    %579 = vmatpush2.bf16.msra.mxu0 0
    %580 = vmatprep.subr.bf16.mxu0 0
    %581 = vmatpush2.bf16.msra.mxu0 0
    %582 = vmatprep.subr.bf16.mxu0 0
    %583 = vmatpush2.bf16.msra.mxu0 0
    %584 = vmatprep.mubr.bf16.mxu0 0
    %585 = vmatmul.mubr.bf16.gmra.mxu0 %v550
    %v586 = vpop.f32.mrf.mxu0
    %v587 = vadd.f32 0.0, %v586
    %v588 = vpop.f32.mrf.mxu0
    %v589 = vadd.f32 0.0, %v588
    %v590 = vpop.f32.mrf.mxu0
    %v591 = vpop.f32.mrf.mxu0
    %592 = vdwg.mxu0
    %v593 = vadd.f32 %v546, %v587
    %v594 = vadd.f32 %v547, %v589
    %v595 = vxor.u32 %v593, 2147483648
    %v596 = vxor.u32 %v594, 2147483648
    %v597 = vmul.f32 %v595, 1.442695
    %v598 = vpow.pop %v597
    %v599 = vmul.f32 %v596, 1.442695
    %v600 = vpow.pop %v599
    %v601 = vadd.f32 %v598, 1.0
    %v602 = vadd.f32 %v600, 1.0
    %v603 = vrcp.pop %v601
    %v604 = vmul.f32 1.0, %v603
    %v605 = vrcp.pop %v602
    %v606 = vmul.f32 1.0, %v605
    %v607 = vtanh.pop %v594
    %v608 = vmul.f32 %v604, %v539
    %610 = vrot.lane.b32.xlu0 %v607, 64
    %v611 = vpop.permute.xlu0 %610
    %v613 = vmul.f32 %v604, %v611
    %615 = vrot.lane.b32.xlu0 %v613, 64
    %v616 = vpop.permute.xlu0 %615
    %v618 = vadd.f32 %v608, %v616
    %v619 = vtanh.pop %v618
    %621 = vrot.lane.b32.xlu0 %v619, 64
    %v622 = vpop.permute.xlu0 %621
    %v624 = vmul.f32 %v606, %v622
    %v625 = vld [vmem:[#allocation2 + $0x40] sm:$0xff]
    %v626 = vld [vmem:[#allocation2 + $0x48] sm:$0xff]
    %v627 = vpack.c.bf16 %v624, %v624
    %v629 = vsel %vm311, %v627, 0
    %631 = vmatprep.subr.bf16.mxu0 0
    %632 = vmatpush1.bf16.msra.mxu0 0
    %633 = vmatprep.subr.bf16.mxu0 0
    %634 = vmatpush1.bf16.msra.mxu0 0
    %635 = vmatprep.subr.bf16.mxu0 0
    %636 = vmatpush1.bf16.msra.mxu0 0
    %637 = vmatprep.subr.bf16.mxu0 0
    %638 = vmatpush1.bf16.msra.mxu0 0
    %639 = vmatprep.subr.bf16.mxu0 %v302
    %640 = vmatpush1.bf16.msra.mxu0 %v301
    %641 = vmatprep.subr.bf16.mxu0 %v300
    %642 = vmatpush1.bf16.msra.mxu0 %v299
    %643 = vmatprep.subr.bf16.mxu0 %v298
    %644 = vmatpush1.bf16.msra.mxu0 %v297
    %645 = vmatprep.subr.bf16.mxu0 %v296
    %646 = vmatpush1.bf16.msra.mxu0 %v295
    %647 = vmatprep.subr.bf16.mxu0 0
    %648 = vmatpush2.bf16.msra.mxu0 0
    %649 = vmatprep.subr.bf16.mxu0 0
    %650 = vmatpush2.bf16.msra.mxu0 0
    %651 = vmatprep.subr.bf16.mxu0 0
    %652 = vmatpush2.bf16.msra.mxu0 0
    %653 = vmatprep.subr.bf16.mxu0 0
    %654 = vmatpush2.bf16.msra.mxu0 0
    %655 = vmatprep.subr.bf16.mxu0 0
    %656 = vmatpush2.bf16.msra.mxu0 0
    %657 = vmatprep.subr.bf16.mxu0 0
    %658 = vmatpush2.bf16.msra.mxu0 0
    %659 = vmatprep.subr.bf16.mxu0 0
    %660 = vmatpush2.bf16.msra.mxu0 0
    %661 = vmatprep.subr.bf16.mxu0 0
    %662 = vmatpush2.bf16.msra.mxu0 0
    %663 = vmatprep.mubr.bf16.mxu0 0
    %664 = vmatmul.mubr.bf16.gmra.mxu0 %v629
    %v665 = vpop.f32.mrf.mxu0
    %v666 = vadd.f32 0.0, %v665
    %v667 = vpop.f32.mrf.mxu0
    %v668 = vadd.f32 0.0, %v667
    %v669 = vpop.f32.mrf.mxu0
    %v670 = vpop.f32.mrf.mxu0
    %671 = vdwg.mxu0
    %v672 = vadd.f32 %v625, %v666
    %v673 = vadd.f32 %v626, %v668
    %v674 = vxor.u32 %v672, 2147483648
    %v675 = vxor.u32 %v673, 2147483648
    %v676 = vmul.f32 %v674, 1.442695
    %v677 = vpow.pop %v676
    %v678 = vmul.f32 %v675, 1.442695
    %v679 = vpow.pop %v678
    %v680 = vadd.f32 %v677, 1.0
    %v681 = vadd.f32 %v679, 1.0
    %v682 = vrcp.pop %v680
    %v683 = vmul.f32 1.0, %v682
    %v684 = vrcp.pop %v681
    %v685 = vmul.f32 1.0, %v684
    %v686 = vtanh.pop %v673
    %v687 = vmul.f32 %v683, %v618
    %689 = vrot.lane.b32.xlu0 %v686, 64
    %v690 = vpop.permute.xlu0 %689
    %v692 = vmul.f32 %v683, %v690
    %694 = vrot.lane.b32.xlu0 %v692, 64
    %v695 = vpop.permute.xlu0 %694
    %v697 = vadd.f32 %v687, %v695
    %v698 = vtanh.pop %v697
    %700 = vrot.lane.b32.xlu0 %v698, 64
    %v701 = vpop.permute.xlu0 %700
    %v703 = vmul.f32 %v685, %v701
    %v704 = vld [vmem:[#allocation2 + $0x50] sm:$0xff]
    %v705 = vld [vmem:[#allocation2 + $0x58] sm:$0xff]
    %v706 = vpack.c.bf16 %v703, %v703
    %v708 = vsel %vm311, %v706, 0
    %710 = vmatprep.subr.bf16.mxu0 0
    %711 = vmatpush1.bf16.msra.mxu0 0
    %712 = vmatprep.subr.bf16.mxu0 0
    %713 = vmatpush1.bf16.msra.mxu0 0
    %714 = vmatprep.subr.bf16.mxu0 0
    %715 = vmatpush1.bf16.msra.mxu0 0
    %716 = vmatprep.subr.bf16.mxu0 0
    %717 = vmatpush1.bf16.msra.mxu0 0
    %718 = vmatprep.subr.bf16.mxu0 %v302
    %719 = vmatpush1.bf16.msra.mxu0 %v301
    %720 = vmatprep.subr.bf16.mxu0 %v300
    %721 = vmatpush1.bf16.msra.mxu0 %v299
    %722 = vmatprep.subr.bf16.mxu0 %v298
    %723 = vmatpush1.bf16.msra.mxu0 %v297
    %724 = vmatprep.subr.bf16.mxu0 %v296
    %725 = vmatpush1.bf16.msra.mxu0 %v295
    %726 = vmatprep.subr.bf16.mxu0 0
    %727 = vmatpush2.bf16.msra.mxu0 0
    %728 = vmatprep.subr.bf16.mxu0 0
    %729 = vmatpush2.bf16.msra.mxu0 0
    %730 = vmatprep.subr.bf16.mxu0 0
    %731 = vmatpush2.bf16.msra.mxu0 0
    %732 = vmatprep.subr.bf16.mxu0 0
    %733 = vmatpush2.bf16.msra.mxu0 0
    %734 = vmatprep.subr.bf16.mxu0 0
    %735 = vmatpush2.bf16.msra.mxu0 0
    %736 = vmatprep.subr.bf16.mxu0 0
    %737 = vmatpush2.bf16.msra.mxu0 0
    %738 = vmatprep.subr.bf16.mxu0 0
    %739 = vmatpush2.bf16.msra.mxu0 0
    %740 = vmatprep.subr.bf16.mxu0 0
    %741 = vmatpush2.bf16.msra.mxu0 0
    %742 = vmatprep.mubr.bf16.mxu0 0
    %743 = vmatmul.mubr.bf16.gmra.mxu0 %v708
    %v744 = vpop.f32.mrf.mxu0
    %v745 = vadd.f32 0.0, %v744
    %v746 = vpop.f32.mrf.mxu0
    %v747 = vadd.f32 0.0, %v746
    %v748 = vpop.f32.mrf.mxu0
    %v749 = vpop.f32.mrf.mxu0
    %750 = vdwg.mxu0
    %v751 = vadd.f32 %v704, %v745
    %v752 = vadd.f32 %v705, %v747
    %v753 = vxor.u32 %v751, 2147483648
    %v754 = vxor.u32 %v752, 2147483648
    %v755 = vmul.f32 %v753, 1.442695
    %v756 = vpow.pop %v755
    %v757 = vmul.f32 %v754, 1.442695
    %v758 = vpow.pop %v757
    %v759 = vadd.f32 %v756, 1.0
    %v760 = vadd.f32 %v758, 1.0
    %v761 = vrcp.pop %v759
    %v762 = vmul.f32 1.0, %v761
    %v763 = vrcp.pop %v760
    %v764 = vmul.f32 1.0, %v763
    %v765 = vtanh.pop %v752
    %v766 = vmul.f32 %v762, %v697
    %768 = vrot.lane.b32.xlu0 %v765, 64
    %v769 = vpop.permute.xlu0 %768
    %v771 = vmul.f32 %v762, %v769
    %773 = vrot.lane.b32.xlu0 %v771, 64
    %v774 = vpop.permute.xlu0 %773
    %v776 = vadd.f32 %v766, %v774
    %v777 = vtanh.pop %v776
    %779 = vrot.lane.b32.xlu0 %v777, 64
    %v780 = vpop.permute.xlu0 %779
    %v782 = vmul.f32 %v764, %v780
    %v783 = vld [vmem:[#allocation2 + $0x60] sm:$0xff]
    %v784 = vld [vmem:[#allocation2 + $0x68] sm:$0xff]
    %v785 = vpack.c.bf16 %v782, %v782
    %v787 = vsel %vm311, %v785, 0
    %789 = vmatprep.subr.bf16.mxu0 0
    %790 = vmatpush1.bf16.msra.mxu0 0
    %791 = vmatprep.subr.bf16.mxu0 0
    %792 = vmatpush1.bf16.msra.mxu0 0
    %793 = vmatprep.subr.bf16.mxu0 0
    %794 = vmatpush1.bf16.msra.mxu0 0
    %795 = vmatprep.subr.bf16.mxu0 0
    %796 = vmatpush1.bf16.msra.mxu0 0
    %797 = vmatprep.subr.bf16.mxu0 %v302
    %798 = vmatpush1.bf16.msra.mxu0 %v301
    %799 = vmatprep.subr.bf16.mxu0 %v300
    %800 = vmatpush1.bf16.msra.mxu0 %v299
    %801 = vmatprep.subr.bf16.mxu0 %v298
    %802 = vmatpush1.bf16.msra.mxu0 %v297
    %803 = vmatprep.subr.bf16.mxu0 %v296
    %804 = vmatpush1.bf16.msra.mxu0 %v295
    %805 = vmatprep.subr.bf16.mxu0 0
    %806 = vmatpush2.bf16.msra.mxu0 0
    %807 = vmatprep.subr.bf16.mxu0 0
    %808 = vmatpush2.bf16.msra.mxu0 0
    %809 = vmatprep.subr.bf16.mxu0 0
    %810 = vmatpush2.bf16.msra.mxu0 0
    %811 = vmatprep.subr.bf16.mxu0 0
    %812 = vmatpush2.bf16.msra.mxu0 0
    %813 = vmatprep.subr.bf16.mxu0 0
    %814 = vmatpush2.bf16.msra.mxu0 0
    %815 = vmatprep.subr.bf16.mxu0 0
    %816 = vmatpush2.bf16.msra.mxu0 0
    %817 = vmatprep.subr.bf16.mxu0 0
    %818 = vmatpush2.bf16.msra.mxu0 0
    %819 = vmatprep.subr.bf16.mxu0 0
    %820 = vmatpush2.bf16.msra.mxu0 0
    %821 = vmatprep.mubr.bf16.mxu0 0
    %822 = vmatmul.mubr.bf16.gmra.mxu0 %v787
    %v823 = vpop.f32.mrf.mxu0
    %v824 = vadd.f32 0.0, %v823
    %v825 = vpop.f32.mrf.mxu0
    %v826 = vadd.f32 0.0, %v825
    %v827 = vpop.f32.mrf.mxu0
    %v828 = vpop.f32.mrf.mxu0
    %829 = vdwg.mxu0
    %v830 = vadd.f32 %v783, %v824
    %v831 = vadd.f32 %v784, %v826
    %v832 = vxor.u32 %v830, 2147483648
    %v833 = vxor.u32 %v831, 2147483648
    %v834 = vmul.f32 %v832, 1.442695
    %v835 = vpow.pop %v834
    %v836 = vmul.f32 %v833, 1.442695
    %v837 = vpow.pop %v836
    %v838 = vadd.f32 %v835, 1.0
    %v839 = vadd.f32 %v837, 1.0
    %v840 = vrcp.pop %v838
    %v841 = vmul.f32 1.0, %v840
    %v842 = vrcp.pop %v839
    %v843 = vmul.f32 1.0, %v842
    %v844 = vtanh.pop %v831
    %v845 = vmul.f32 %v841, %v776
    %847 = vrot.lane.b32.xlu0 %v844, 64
    %v848 = vpop.permute.xlu0 %847
    %v850 = vmul.f32 %v841, %v848
    %852 = vrot.lane.b32.xlu0 %v850, 64
    %v853 = vpop.permute.xlu0 %852
    %v855 = vadd.f32 %v845, %v853
    %v856 = vtanh.pop %v855
    %858 = vrot.lane.b32.xlu0 %v856, 64
    %v859 = vpop.permute.xlu0 %858
    %v861 = vmul.f32 %v843, %v859
    %v862 = vld [vmem:[#allocation2 + $0x70] sm:$0xff]
    %v863 = vld [vmem:[#allocation2 + $0x78] sm:$0xff]
    %v864 = vpack.c.bf16 %v861, %v861
    %v866 = vsel %vm311, %v864, 0
    %868 = vmatprep.subr.bf16.mxu0 0
    %869 = vmatpush1.bf16.msra.mxu0 0
    %870 = vmatprep.subr.bf16.mxu0 0
    %871 = vmatpush1.bf16.msra.mxu0 0
    %872 = vmatprep.subr.bf16.mxu0 0
    %873 = vmatpush1.bf16.msra.mxu0 0
    %874 = vmatprep.subr.bf16.mxu0 0
    %875 = vmatpush1.bf16.msra.mxu0 0
    %876 = vmatprep.subr.bf16.mxu0 %v302
    %877 = vmatpush1.bf16.msra.mxu0 %v301
    %878 = vmatprep.subr.bf16.mxu0 %v300
    %879 = vmatpush1.bf16.msra.mxu0 %v299
    %880 = vmatprep.subr.bf16.mxu0 %v298
    %881 = vmatpush1.bf16.msra.mxu0 %v297
    %882 = vmatprep.subr.bf16.mxu0 %v296
    %883 = vmatpush1.bf16.msra.mxu0 %v295
    %884 = vmatprep.subr.bf16.mxu0 0
    %885 = vmatpush2.bf16.msra.mxu0 0
    %886 = vmatprep.subr.bf16.mxu0 0
    %887 = vmatpush2.bf16.msra.mxu0 0
    %888 = vmatprep.subr.bf16.mxu0 0
    %889 = vmatpush2.bf16.msra.mxu0 0
    %890 = vmatprep.subr.bf16.mxu0 0
    %891 = vmatpush2.bf16.msra.mxu0 0
    %892 = vmatprep.subr.bf16.mxu0 0
    %893 = vmatpush2.bf16.msra.mxu0 0
    %894 = vmatprep.subr.bf16.mxu0 0
    %895 = vmatpush2.bf16.msra.mxu0 0
    %896 = vmatprep.subr.bf16.mxu0 0
    %897 = vmatpush2.bf16.msra.mxu0 0
    %898 = vmatprep.subr.bf16.mxu0 0
    %899 = vmatpush2.bf16.msra.mxu0 0
    %900 = vmatprep.mubr.bf16.mxu0 0
    %901 = vmatmul.mubr.bf16.gmra.mxu0 %v866
    %v902 = vpop.f32.mrf.mxu0
    %v903 = vadd.f32 0.0, %v902
    %v904 = vpop.f32.mrf.mxu0
    %v905 = vadd.f32 0.0, %v904
    %v906 = vpop.f32.mrf.mxu0
    %v907 = vpop.f32.mrf.mxu0
    %908 = vdwg.mxu0
    %v909 = vadd.f32 %v862, %v903
    %v910 = vadd.f32 %v863, %v905
    %v911 = vxor.u32 %v909, 2147483648
    %v912 = vxor.u32 %v910, 2147483648
    %v913 = vmul.f32 %v911, 1.442695
    %v914 = vpow.pop %v913
    %v915 = vmul.f32 %v912, 1.442695
    %v916 = vpow.pop %v915
    %v917 = vadd.f32 %v914, 1.0
    %v918 = vadd.f32 %v916, 1.0
    %v919 = vrcp.pop %v917
    %v920 = vmul.f32 1.0, %v919
    %v921 = vrcp.pop %v918
    %v922 = vmul.f32 1.0, %v921
    %v923 = vtanh.pop %v910
    %v924 = vmul.f32 %v920, %v855
    %926 = vrot.lane.b32.xlu0 %v923, 64
    %v927 = vpop.permute.xlu0 %926
    %v929 = vmul.f32 %v920, %v927
    %931 = vrot.lane.b32.xlu0 %v929, 64
    %v932 = vpop.permute.xlu0 %931
    %v934 = vadd.f32 %v924, %v932
    %v935 = vtanh.pop %v934
    %937 = vrot.lane.b32.xlu0 %v935, 64
    %v938 = vpop.permute.xlu0 %937
    %v940 = vmul.f32 %v922, %v938
    %v941 = vld [vmem:[#allocation2 + $0x80] sm:$0xff]
    %v942 = vld [vmem:[#allocation2 + $0x88] sm:$0xff]
    %v943 = vpack.c.bf16 %v940, %v940
    %v945 = vsel %vm311, %v943, 0
    %947 = vmatprep.subr.bf16.mxu0 0
    %948 = vmatpush1.bf16.msra.mxu0 0
    %949 = vmatprep.subr.bf16.mxu0 0
    %950 = vmatpush1.bf16.msra.mxu0 0
    %951 = vmatprep.subr.bf16.mxu0 0
    %952 = vmatpush1.bf16.msra.mxu0 0
    %953 = vmatprep.subr.bf16.mxu0 0
    %954 = vmatpush1.bf16.msra.mxu0 0
    %955 = vmatprep.subr.bf16.mxu0 %v302
    %956 = vmatpush1.bf16.msra.mxu0 %v301
    %957 = vmatprep.subr.bf16.mxu0 %v300
    %958 = vmatpush1.bf16.msra.mxu0 %v299
    %959 = vmatprep.subr.bf16.mxu0 %v298
    %960 = vmatpush1.bf16.msra.mxu0 %v297
    %961 = vmatprep.subr.bf16.mxu0 %v296
    %962 = vmatpush1.bf16.msra.mxu0 %v295
    %963 = vmatprep.subr.bf16.mxu0 0
    %964 = vmatpush2.bf16.msra.mxu0 0
    %965 = vmatprep.subr.bf16.mxu0 0
    %966 = vmatpush2.bf16.msra.mxu0 0
    %967 = vmatprep.subr.bf16.mxu0 0
    %968 = vmatpush2.bf16.msra.mxu0 0
    %969 = vmatprep.subr.bf16.mxu0 0
    %970 = vmatpush2.bf16.msra.mxu0 0
    %971 = vmatprep.subr.bf16.mxu0 0
    %972 = vmatpush2.bf16.msra.mxu0 0
    %973 = vmatprep.subr.bf16.mxu0 0
    %974 = vmatpush2.bf16.msra.mxu0 0
    %975 = vmatprep.subr.bf16.mxu0 0
    %976 = vmatpush2.bf16.msra.mxu0 0
    %977 = vmatprep.subr.bf16.mxu0 0
    %978 = vmatpush2.bf16.msra.mxu0 0
    %979 = vmatprep.mubr.bf16.mxu0 0
    %980 = vmatmul.mubr.bf16.gmra.mxu0 %v945
    %v981 = vpop.f32.mrf.mxu0
    %v982 = vadd.f32 0.0, %v981
    %v983 = vpop.f32.mrf.mxu0
    %v984 = vadd.f32 0.0, %v983
    %v985 = vpop.f32.mrf.mxu0
    %v986 = vpop.f32.mrf.mxu0
    %987 = vdwg.mxu0
    %v988 = vadd.f32 %v941, %v982
    %v989 = vadd.f32 %v942, %v984
    %v990 = vxor.u32 %v988, 2147483648
    %v991 = vxor.u32 %v989, 2147483648
    %v992 = vmul.f32 %v990, 1.442695
    %v993 = vpow.pop %v992
    %v994 = vmul.f32 %v991, 1.442695
    %v995 = vpow.pop %v994
    %v996 = vadd.f32 %v993, 1.0
    %v997 = vadd.f32 %v995, 1.0
    %v998 = vrcp.pop %v996
    %v999 = vmul.f32 1.0, %v998
    %v1000 = vrcp.pop %v997
    %v1001 = vmul.f32 1.0, %v1000
    %v1002 = vtanh.pop %v989
    %v1003 = vmul.f32 %v999, %v934
    %1005 = vrot.lane.b32.xlu0 %v1002, 64
    %v1006 = vpop.permute.xlu0 %1005
    %v1008 = vmul.f32 %v999, %v1006
    %1010 = vrot.lane.b32.xlu0 %v1008, 64
    %v1011 = vpop.permute.xlu0 %1010
    %v1013 = vadd.f32 %v1003, %v1011
    %v1014 = vtanh.pop %v1013
    %1016 = vrot.lane.b32.xlu0 %v1014, 64
    %v1017 = vpop.permute.xlu0 %1016
    %v1019 = vmul.f32 %v1001, %v1017
    %v1020 = vld [vmem:[#allocation2 + $0x90] sm:$0xff]
    %v1021 = vld [vmem:[#allocation2 + $0x98] sm:$0xff]
    %v1022 = vpack.c.bf16 %v1019, %v1019
    %v1024 = vsel %vm311, %v1022, 0
    %1026 = vmatprep.subr.bf16.mxu0 0
    %1027 = vmatpush1.bf16.msra.mxu0 0
    %1028 = vmatprep.subr.bf16.mxu0 0
    %1029 = vmatpush1.bf16.msra.mxu0 0
    %1030 = vmatprep.subr.bf16.mxu0 0
    %1031 = vmatpush1.bf16.msra.mxu0 0
    %1032 = vmatprep.subr.bf16.mxu0 0
    %1033 = vmatpush1.bf16.msra.mxu0 0
    %1034 = vmatprep.subr.bf16.mxu0 %v302
    %1035 = vmatpush1.bf16.msra.mxu0 %v301
    %1036 = vmatprep.subr.bf16.mxu0 %v300
    %1037 = vmatpush1.bf16.msra.mxu0 %v299
    %1038 = vmatprep.subr.bf16.mxu0 %v298
    %1039 = vmatpush1.bf16.msra.mxu0 %v297
    %1040 = vmatprep.subr.bf16.mxu0 %v296
    %1041 = vmatpush1.bf16.msra.mxu0 %v295
    %1042 = vmatprep.subr.bf16.mxu0 0
    %1043 = vmatpush2.bf16.msra.mxu0 0
    %1044 = vmatprep.subr.bf16.mxu0 0
    %1045 = vmatpush2.bf16.msra.mxu0 0
    %1046 = vmatprep.subr.bf16.mxu0 0
    %1047 = vmatpush2.bf16.msra.mxu0 0
    %1048 = vmatprep.subr.bf16.mxu0 0
    %1049 = vmatpush2.bf16.msra.mxu0 0
    %1050 = vmatprep.subr.bf16.mxu0 0
    %1051 = vmatpush2.bf16.msra.mxu0 0
    %1052 = vmatprep.subr.bf16.mxu0 0
    %1053 = vmatpush2.bf16.msra.mxu0 0
    %1054 = vmatprep.subr.bf16.mxu0 0
    %1055 = vmatpush2.bf16.msra.mxu0 0
    %1056 = vmatprep.subr.bf16.mxu0 0
    %1057 = vmatpush2.bf16.msra.mxu0 0
    %1058 = vmatprep.mubr.bf16.mxu0 0
    %1059 = vmatmul.mubr.bf16.gmra.mxu0 %v1024
    %v1060 = vpop.f32.mrf.mxu0
    %v1061 = vadd.f32 0.0, %v1060
    %v1062 = vpop.f32.mrf.mxu0
    %v1063 = vadd.f32 0.0, %v1062
    %v1064 = vpop.f32.mrf.mxu0
    %v1065 = vpop.f32.mrf.mxu0
    %1066 = vdwg.mxu0
    %v1067 = vadd.f32 %v1020, %v1061
    %v1068 = vadd.f32 %v1021, %v1063
    %v1069 = vxor.u32 %v1067, 2147483648
    %v1070 = vxor.u32 %v1068, 2147483648
    %v1071 = vmul.f32 %v1069, 1.442695
    %v1072 = vpow.pop %v1071
    %v1073 = vmul.f32 %v1070, 1.442695
    %v1074 = vpow.pop %v1073
    %v1075 = vadd.f32 %v1072, 1.0
    %v1076 = vadd.f32 %v1074, 1.0
    %v1077 = vrcp.pop %v1075
    %v1078 = vmul.f32 1.0, %v1077
    %v1079 = vrcp.pop %v1076
    %v1080 = vmul.f32 1.0, %v1079
    %v1081 = vtanh.pop %v1068
    %v1082 = vmul.f32 %v1078, %v1013
    %1084 = vrot.lane.b32.xlu0 %v1081, 64
    %v1085 = vpop.permute.xlu0 %1084
    %v1087 = vmul.f32 %v1078, %v1085
    %1089 = vrot.lane.b32.xlu0 %v1087, 64
    %v1090 = vpop.permute.xlu0 %1089
    %v1092 = vadd.f32 %v1082, %v1090
    %v1093 = vtanh.pop %v1092
    %1095 = vrot.lane.b32.xlu0 %v1093, 64
    %v1096 = vpop.permute.xlu0 %1095
    %v1098 = vmul.f32 %v1080, %v1096
    %v1099 = vpack.c.bf16 %v1098, %v1098
    %v1100 = vld [vmem:[%s5] sm:$0xf]
    %v1101 = vld [vmem:[%s5 + $0x4] sm:$0xf]
    %v1102 = vld [vmem:[%s5 + $0x8] sm:$0xf]
    %v1103 = vld [vmem:[%s5 + $0xc] sm:$0xf]
    %v1104 = vld [vmem:[%s5 + $0x10] sm:$0xf]
    %v1105 = vld [vmem:[%s5 + $0x14] sm:$0xf]
    %v1106 = vld [vmem:[%s5 + $0x18] sm:$0xf]
    %v1107 = vld [vmem:[%s5 + $0x1c] sm:$0xf]
    %v1108 = vld [vmem:[#allocation6] sm:$0xf]
    %v1109 = vld [vmem:[#allocation8] sm:$0xf]
    %v1110 = vld [vmem:[#allocation8 + $0x4] sm:$0xf]
    %v1113 = vunpack.c.l.b16 %v1109
    %v1114 = vunpack.c.l.b16 %v1110
    %v1115 = vpack.c.b16 %v1114, %v1113
    %vm1117 = vcmask 130048
    %v1119 = vsel %vm1117, %v1108, 0
    %1121 = vmatprep.subr.bf16.mxu0 0
    %1122 = vmatpush1.bf16.msra.mxu0 0
    %1123 = vmatprep.subr.bf16.mxu0 0
    %1124 = vmatpush1.bf16.msra.mxu0 0
    %1125 = vmatprep.subr.bf16.mxu0 0
    %1126 = vmatpush1.bf16.msra.mxu0 0
    %1127 = vmatprep.subr.bf16.mxu0 0
    %1128 = vmatpush1.bf16.msra.mxu0 0
    %1129 = vmatprep.subr.bf16.mxu0 0
    %1130 = vmatpush1.bf16.msra.mxu0 0
    %1131 = vmatprep.subr.bf16.mxu0 0
    %1132 = vmatpush1.bf16.msra.mxu0 0
    %1133 = vmatprep.subr.bf16.mxu0 0
    %1134 = vmatpush1.bf16.msra.mxu0 0
    %1135 = vmatprep.subr.bf16.mxu0 0
    %1136 = vmatpush1.bf16.msra.mxu0 %v1115
    %1137 = vmatprep.subr.bf16.mxu0 0
    %1138 = vmatpush2.bf16.msra.mxu0 0
    %1139 = vmatprep.subr.bf16.mxu0 0
    %1140 = vmatpush2.bf16.msra.mxu0 0
    %1141 = vmatprep.subr.bf16.mxu0 0
    %1142 = vmatpush2.bf16.msra.mxu0 0
    %1143 = vmatprep.subr.bf16.mxu0 0
    %1144 = vmatpush2.bf16.msra.mxu0 0
    %1145 = vmatprep.subr.bf16.mxu0 0
    %1146 = vmatpush2.bf16.msra.mxu0 0
    %1147 = vmatprep.subr.bf16.mxu0 0
    %1148 = vmatpush2.bf16.msra.mxu0 0
    %1149 = vmatprep.subr.bf16.mxu0 0
    %1150 = vmatpush2.bf16.msra.mxu0 0
    %1151 = vmatprep.subr.bf16.mxu0 0
    %1152 = vmatpush2.bf16.msra.mxu0 0
    %1153 = vmatprep.mubr.bf16.mxu0 0
    %1154 = vmatmul.mubr.bf16.gmra.mxu0 %v1119
    %v1155 = vpop.f32.mrf.mxu0
    %v1156 = vadd.f32 0.0, %v1155
    %v1157 = vpop.f32.mrf.mxu0
    %v1158 = vpop.f32.mrf.mxu0
    %v1159 = vpop.f32.mrf.mxu0
    %1160 = vdwg.mxu0
    %v1169 = vunpack.c.l.b16 %v1100
    %v1170 = vunpack.c.l.b16 %v1101
    %v1171 = vunpack.c.l.b16 %v1102
    %v1172 = vunpack.c.l.b16 %v1103
    %v1173 = vunpack.c.l.b16 %v1104
    %v1174 = vunpack.c.l.b16 %v1105
    %v1175 = vunpack.c.l.b16 %v1106
    %v1176 = vunpack.c.l.b16 %v1107
    %v1177 = vpack.c.b16 %v1170, %v1169
    %v1178 = vpack.c.b16 %v1172, %v1171
    %v1179 = vpack.c.b16 %v1174, %v1173
    %v1180 = vpack.c.b16 %v1176, %v1175
    %v1186 = vsel %vm311, %v1099, 0
    %1188 = vmatprep.subr.bf16.mxu0 0
    %1189 = vmatpush1.bf16.msra.mxu0 0
    %1190 = vmatprep.subr.bf16.mxu0 0
    %1191 = vmatpush1.bf16.msra.mxu0 0
    %1192 = vmatprep.subr.bf16.mxu0 0
    %1193 = vmatpush1.bf16.msra.mxu0 0
    %1194 = vmatprep.subr.bf16.mxu0 0
    %1195 = vmatpush1.bf16.msra.mxu0 0
    %1196 = vmatprep.subr.bf16.mxu0 0
    %1197 = vmatpush1.bf16.msra.mxu0 %v1180
    %1198 = vmatprep.subr.bf16.mxu0 0
    %1199 = vmatpush1.bf16.msra.mxu0 %v1179
    %1200 = vmatprep.subr.bf16.mxu0 0
    %1201 = vmatpush1.bf16.msra.mxu0 %v1178
    %1202 = vmatprep.subr.bf16.mxu0 0
    %1203 = vmatpush1.bf16.msra.mxu0 %v1177
    %1204 = vmatprep.subr.bf16.mxu0 0
    %1205 = vmatpush2.bf16.msra.mxu0 0
    %1206 = vmatprep.subr.bf16.mxu0 0
    %1207 = vmatpush2.bf16.msra.mxu0 0
    %1208 = vmatprep.subr.bf16.mxu0 0
    %1209 = vmatpush2.bf16.msra.mxu0 0
    %1210 = vmatprep.subr.bf16.mxu0 0
    %1211 = vmatpush2.bf16.msra.mxu0 0
    %1212 = vmatprep.subr.bf16.mxu0 0
    %1213 = vmatpush2.bf16.msra.mxu0 0
    %1214 = vmatprep.subr.bf16.mxu0 0
    %1215 = vmatpush2.bf16.msra.mxu0 0
    %1216 = vmatprep.subr.bf16.mxu0 0
    %1217 = vmatpush2.bf16.msra.mxu0 0
    %1218 = vmatprep.subr.bf16.mxu0 0
    %1219 = vmatpush2.bf16.msra.mxu0 0
    %1220 = vmatprep.mubr.bf16.mxu0 0
    %1221 = vmatmul.mubr.bf16.gmra.mxu0 %v1186
    %v1222 = vpop.f32.mrf.mxu0
    %v1223 = vadd.f32 %v1156, %v1222
    %v1224 = vpop.f32.mrf.mxu0
    %v1225 = vpop.f32.mrf.mxu0
    %v1226 = vpop.f32.mrf.mxu0
    %1227 = vdwg.mxu0
    %v1228 = vmax.f32 %v1223, 0.0
    %v1229 = vpack.c.bf16 %v1228, %v1228
    %v1230 = vld [vmem:[%s7] sm:$0xf]
    %v1231 = vld [vmem:[%s7 + $0x4] sm:$0xf]
    %v1232 = vld [vmem:[%s7 + $0x8] sm:$0xf]
    %v1233 = vld [vmem:[%s7 + $0xc] sm:$0xf]
    %v1234 = vld [vmem:[%s7 + $0x10] sm:$0xf]
    %v1235 = vld [vmem:[%s7 + $0x14] sm:$0xf]
    %v1236 = vld [vmem:[%s7 + $0x18] sm:$0xf]
    %v1237 = vld [vmem:[%s7 + $0x1c] sm:$0xf]
    %v1238 = vld [vmem:[%s7 + $0x20] sm:$0xf]
    %v1239 = vld [vmem:[%s7 + $0x24] sm:$0xf]
    %v1240 = vld [vmem:[%s7 + $0x28] sm:$0xf]
    %v1241 = vld [vmem:[%s7 + $0x2c] sm:$0xf]
    %v1242 = vld [vmem:[%s7 + $0x30] sm:$0xf]
    %v1243 = vld [vmem:[%s7 + $0x34] sm:$0xf]
    %v1244 = vld [vmem:[%s7 + $0x38] sm:$0xf]
    %v1245 = vld [vmem:[%s7 + $0x3c] sm:$0xf]
    %v1262 = vunpack.c.l.b16 %v1230
    %v1263 = vunpack.c.l.b16 %v1231
    %v1264 = vunpack.c.l.b16 %v1232
    %v1265 = vunpack.c.l.b16 %v1233
    %v1266 = vunpack.c.l.b16 %v1234
    %v1267 = vunpack.c.l.b16 %v1235
    %v1268 = vunpack.c.l.b16 %v1236
    %v1269 = vunpack.c.l.b16 %v1237
    %v1270 = vunpack.c.l.b16 %v1238
    %v1271 = vunpack.c.l.b16 %v1239
    %v1272 = vunpack.c.l.b16 %v1240
    %v1273 = vunpack.c.l.b16 %v1241
    %v1274 = vunpack.c.l.b16 %v1242
    %v1275 = vunpack.c.l.b16 %v1243
    %v1276 = vunpack.c.l.b16 %v1244
    %v1277 = vunpack.c.l.b16 %v1245
    %v1278 = vpack.c.b16 %v1263, %v1262
    %v1279 = vpack.c.b16 %v1265, %v1264
    %v1280 = vpack.c.b16 %v1267, %v1266
    %v1281 = vpack.c.b16 %v1269, %v1268
    %v1282 = vpack.c.b16 %v1271, %v1270
    %v1283 = vpack.c.b16 %v1273, %v1272
    %v1284 = vpack.c.b16 %v1275, %v1274
    %v1285 = vpack.c.b16 %v1277, %v1276
    %1294 = vmatprep.subr.bf16.mxu0 0
    %1295 = vmatpush1.bf16.msra.mxu0 %v1285
    %1296 = vmatprep.subr.bf16.mxu0 0
    %1297 = vmatpush1.bf16.msra.mxu0 %v1284
    %1298 = vmatprep.subr.bf16.mxu0 0
    %1299 = vmatpush1.bf16.msra.mxu0 %v1283
    %1300 = vmatprep.subr.bf16.mxu0 0
    %1301 = vmatpush1.bf16.msra.mxu0 %v1282
    %1302 = vmatprep.subr.bf16.mxu0 0
    %1303 = vmatpush1.bf16.msra.mxu0 %v1281
    %1304 = vmatprep.subr.bf16.mxu0 0
    %1305 = vmatpush1.bf16.msra.mxu0 %v1280
    %1306 = vmatprep.subr.bf16.mxu0 0
    %1307 = vmatpush1.bf16.msra.mxu0 %v1279
    %1308 = vmatprep.subr.bf16.mxu0 0
    %1309 = vmatpush1.bf16.msra.mxu0 %v1278
    %1310 = vmatprep.subr.bf16.mxu0 0
    %1311 = vmatpush2.bf16.msra.mxu0 0
    %1312 = vmatprep.subr.bf16.mxu0 0
    %1313 = vmatpush2.bf16.msra.mxu0 0
    %1314 = vmatprep.subr.bf16.mxu0 0
    %1315 = vmatpush2.bf16.msra.mxu0 0
    %1316 = vmatprep.subr.bf16.mxu0 0
    %1317 = vmatpush2.bf16.msra.mxu0 0
    %1318 = vmatprep.subr.bf16.mxu0 0
    %1319 = vmatpush2.bf16.msra.mxu0 0
    %1320 = vmatprep.subr.bf16.mxu0 0
    %1321 = vmatpush2.bf16.msra.mxu0 0
    %1322 = vmatprep.subr.bf16.mxu0 0
    %1323 = vmatpush2.bf16.msra.mxu0 0
    %1324 = vmatprep.subr.bf16.mxu0 0
    %1325 = vmatpush2.bf16.msra.mxu0 0
    %1326 = vmatprep.mubr.bf16.mxu0 0
    %1327 = vmatmul.mubr.bf16.gmra.mxu0 %v1229
    %v1328 = vpop.f32.mrf.mxu0
    %v1329 = vadd.f32 0.0, %v1328
    %v1330 = vpop.f32.mrf.mxu0
    %v1331 = vpop.f32.mrf.mxu0
    %v1332 = vpop.f32.mrf.mxu0
    %1333 = vdwg.mxu0
    %v1334 = vmax.f32 %v1329, 0.0
    %v1335 = vpack.c.bf16 %v1334, %v1334
    %v1336 = vld [vmem:[%s8] sm:$0xf]
    %v1337 = vld [vmem:[%s8 + $0x4] sm:$0xf]
    %v1338 = vld [vmem:[%s8 + $0x8] sm:$0xf]
    %v1339 = vld [vmem:[%s8 + $0xc] sm:$0xf]
    %v1340 = vld [vmem:[%s8 + $0x10] sm:$0xf]
    %v1341 = vld [vmem:[%s8 + $0x14] sm:$0xf]
    %v1342 = vld [vmem:[%s8 + $0x18] sm:$0xf]
    %v1343 = vld [vmem:[%s8 + $0x1c] sm:$0xf]
    %v1352 = vunpack.c.l.b16 %v1336
    %v1353 = vunpack.c.l.b16 %v1337
    %v1354 = vunpack.c.l.b16 %v1338
    %v1355 = vunpack.c.l.b16 %v1339
    %v1356 = vunpack.c.l.b16 %v1340
    %v1357 = vunpack.c.l.b16 %v1341
    %v1358 = vunpack.c.l.b16 %v1342
    %v1359 = vunpack.c.l.b16 %v1343
    %v1360 = vpack.c.b16 %v1353, %v1352
    %v1361 = vpack.c.b16 %v1355, %v1354
    %v1362 = vpack.c.b16 %v1357, %v1356
    %v1363 = vpack.c.b16 %v1359, %v1358
    %v1369 = vsel %vm311, %v1335, 0
    %1371 = vmatprep.subr.bf16.mxu0 0
    %1372 = vmatpush1.bf16.msra.mxu0 0
    %1373 = vmatprep.subr.bf16.mxu0 0
    %1374 = vmatpush1.bf16.msra.mxu0 0
    %1375 = vmatprep.subr.bf16.mxu0 0
    %1376 = vmatpush1.bf16.msra.mxu0 0
    %1377 = vmatprep.subr.bf16.mxu0 0
    %1378 = vmatpush1.bf16.msra.mxu0 0
    %1379 = vmatprep.subr.bf16.mxu0 0
    %1380 = vmatpush1.bf16.msra.mxu0 %v1363
    %1381 = vmatprep.subr.bf16.mxu0 0
    %1382 = vmatpush1.bf16.msra.mxu0 %v1362
    %1383 = vmatprep.subr.bf16.mxu0 0
    %1384 = vmatpush1.bf16.msra.mxu0 %v1361
    %1385 = vmatprep.subr.bf16.mxu0 0
    %1386 = vmatpush1.bf16.msra.mxu0 %v1360
    %1387 = vmatprep.subr.bf16.mxu0 0
    %1388 = vmatpush2.bf16.msra.mxu0 0
    %1389 = vmatprep.subr.bf16.mxu0 0
    %1390 = vmatpush2.bf16.msra.mxu0 0
    %1391 = vmatprep.subr.bf16.mxu0 0
    %1392 = vmatpush2.bf16.msra.mxu0 0
    %1393 = vmatprep.subr.bf16.mxu0 0
    %1394 = vmatpush2.bf16.msra.mxu0 0
    %1395 = vmatprep.subr.bf16.mxu0 0
    %1396 = vmatpush2.bf16.msra.mxu0 0
    %1397 = vmatprep.subr.bf16.mxu0 0
    %1398 = vmatpush2.bf16.msra.mxu0 0
    %1399 = vmatprep.subr.bf16.mxu0 0
    %1400 = vmatpush2.bf16.msra.mxu0 0
    %1401 = vmatprep.subr.bf16.mxu0 0
    %1402 = vmatpush2.bf16.msra.mxu0 0
    %1403 = vmatprep.mubr.bf16.mxu0 0
    %1404 = vmatmul.mubr.bf16.gmra.mxu0 %v1369
    %v1405 = vpop.f32.mrf.mxu0
    %v1406 = vadd.f32 0.0, %v1405
    %v1407 = vpop.f32.mrf.mxu0
    %v1408 = vpop.f32.mrf.mxu0
    %v1409 = vpop.f32.mrf.mxu0
    %1410 = vdwg.mxu0
    %v1411 = vxor.u32 %v1406, 2147483648
    %v1412 = vmul.f32 %v1411, 1.442695
    %v1413 = vpow.pop %v1412
    %v1414 = vadd.f32 %v1413, 1.0
    %v1415 = vrcp.pop %v1414
    %v1416 = vmul.f32 1.0, %v1415
    %1417 = vst [vmem:[#allocation9] sm:$0xff] %v1416
    // Predicated region
    $region50: #{tpu_custom_call.1} parent=1 // pred_check
      _
    $region51: #{tpu_custom_call.1} parent=1 // pred_check_branch
      %1419 = sbr.rel (0) target = $region53
    $region52: #{tpu_custom_call.1} parent=1 // pred_region
      %s1421 = ssub.s32 128, 128
      %1422 = vsyncadd [#allocation5], %s1421
      %s1424 = sshll.u32 [#allocation9], 4
      %s1425 = int_to_ptr.vmem [resolvable:$true] %s1424
      %1427 = dma.vmem_to_hbm [thread:$0]  %s1425, 128, %s9, [#allocation5]
    $region53: #{tpu_custom_call.1} parent=1 // pred_fallthru
      _
    // Predicated region
    $region54: #{tpu_custom_call.1} parent=1 // pred_check
      _
    $region55: #{tpu_custom_call.1} parent=1 // pred_check_branch
      %1429 = sbr.rel (0) target = $region57
    $region56: #{tpu_custom_call.1} parent=1 // pred_region
      %1430 = dma.done [#allocation5], 128
    $region57: #{tpu_custom_call.1} parent=1 // pred_fallthru
      _
    %1431 = vsyncpa [#allocation4], 1
    %1432 = vsyncpa [#allocation7], 1
    %1433 = vsyncpa [#allocation5], 1

</llo_original>
